<compile_context>
chip_gen: v7x
topology: tpu7x:2x2x1
jax: 0.10.0
libtpu: 0.0.40
codegen_flags: <defaults>
</compile_context>

<pallas_src>
import functools

import numpy as np
import jax
import jax.numpy as jnp
from jax.experimental import pallas as pl
from jax.experimental.pallas import tpu as pltpu


def calculate_num_p_layers(input_length, min_length=10):
    num_layers = 0
    while input_length > min_length:
        input_length //= 2
        num_layers += 1
    return num_layers


def _is_pow2(n):
    return n > 0 and (n & (n - 1)) == 0


# ---------------------------------------------------------------------------
# Fused kernel: t/s FC branches + all separable-conv layers + pooling.
#
# Operand layouts (all transposed w.r.t. PyTorch so matmuls are lane-dense):
#   fc_w1 (18, 128)  bf16 : block-diag [[t_fc1.W^T, 0], [0, s_fc1.W^T]]
#   fc_w2 (128, 128) bf16 : block-diag [[t_fc2.W^T, 0], [0, s_fc2.W^T]]
#   fc_b  (2, 128)   f32  : row0 = [t_fc1.b | s_fc1.b], row1 = [t_fc2.b | s_fc2.b]
#   dw_pack (4, 128*n_layers) f32 : per-layer 128-aligned slots; rows 0..2 =
#       depthwise taps (PyTorch (C,1,3) transposed), row 3 = depthwise bias
#   pwb_pack (1, *) f32           : pointwise biases at 128-aligned offsets
#   pw_w[i] (c_in, c_out) bf16    : pointwise 1x1 weight (PyTorch (Cout,Cin,1)^T)
# layer_cfgs: static tuple of (c_in, c_out, pool, ci_off, co_off)
# ---------------------------------------------------------------------------
def _encoder_kernel(t_ref, s_ref, p_ref, fcw1_ref, fcw2_ref, fcb_ref,
                    dw_ref, pwb_ref, *rest, B, L0, layer_cfgs):
    n_layers = len(layer_cfgs)
    pw_refs = rest[:n_layers]
    out_ref = rest[n_layers]
    pool_scr = rest[n_layers + 1]

    f32, bf16 = jnp.float32, jnp.bfloat16
    relu = lambda v: jnp.maximum(v, 0.0)

    # ---- t / s MLP branches: two block-diagonal matmuls ----------------------
    # rows [0:B] carry the t branch in lanes [0:64]; rows [B:2B] carry the s
    # branch in lanes [64:128]; off-diagonal lanes are ignored garbage.
    zeros_b9 = jnp.zeros((B, 9), f32)
    ts = jnp.concatenate(
        [jnp.concatenate([t_ref[...], zeros_b9], axis=1),
         jnp.concatenate([zeros_b9, s_ref[...]], axis=1)], axis=0)      # (2B, 18)
    h = relu(jnp.dot(ts.astype(bf16), fcw1_ref[...],
                     preferred_element_type=f32) + fcb_ref[0:1, :])
    h = relu(jnp.dot(h.astype(bf16), fcw2_ref[...],
                     preferred_element_type=f32) + fcb_ref[1:2, :])
    t_out = h[0:B, 0:64]
    s_out = h[B:2 * B, 64:128]

    # ---- p branch: tokens-major (B*L, C) -------------------------------------
    x = p_ref[...]                                     # (B*L0, 9) f32
    L = L0
    for li, (c_in, c_out, pool, ci_off, co_off) in enumerate(layer_cfgs):
        N = B * L

        # Depthwise conv1d (k=3, padding=1, groups=c_in): neighbour rows via
        # sublane rolls; sequence-boundary zeros from an in-kernel iota mask
        # (L is a power of two -> position-in-sequence == n & (L-1)).
        pos = jnp.bitwise_and(
            jax.lax.broadcasted_iota(jnp.int32, (N, 1), 0), L - 1)
        x_prev = jnp.where(pos == 0, 0.0, pltpu.roll(x, 1, axis=0))
        x_next = jnp.where(pos == L - 1, 0.0, pltpu.roll(x, N - 1, axis=0))
        dw = (x_prev * dw_ref[0:1, ci_off:ci_off + c_in]
              + x * dw_ref[1:2, ci_off:ci_off + c_in]
              + x_next * dw_ref[2:3, ci_off:ci_off + c_in]
              + dw_ref[3:4, ci_off:ci_off + c_in])     # (N, c_in) f32

        # Pointwise 1x1 conv: one lane-dense MXU matmul (bf16 in, f32 acc).
        y = (jnp.dot(dw.astype(bf16), pw_refs[li][...],
                     preferred_element_type=f32)
             + pwb_ref[:, co_off:co_off + c_out])      # (N, c_out) f32

        if pool:
            # F.relu + F.max_pool1d(., 2): pair row 2j with 2j+1 (always inside
            # the same sequence since L is even), keep even rows with a
            # stride-2 sublane read from VMEM scratch — no selection matmul.
            y = relu(y)
            m = jnp.maximum(y, pltpu.roll(y, N - 1, axis=0))
            pool_scr[0:N, 0:c_out] = m
            x = pool_scr[pl.ds(0, N // 2, stride=2), pl.ds(0, c_out)]
            L = L // 2
        else:
            # Last layer (no ReLU, matching PyTorch): adaptive_max_pool1d(1)
            # = per-sequence max over the L rows.
            x = jnp.max(y.reshape(B, L, c_out), axis=1)          # (B, c_out)

    # ---- fused output slab: [t | p | s] ---------------------------------------
    p_dim = layer_cfgs[-1][1]
    out_ref[:, 0:64] = t_out
    out_ref[:, 64:64 + p_dim] = x
    out_ref[:, 64 + p_dim:64 + p_dim + 64] = s_out


# ---------------------------------------------------------------------------
# Parameters (deterministic synthetic init, PyTorch-equivalent layouts)
# ---------------------------------------------------------------------------
def init_params(key, window_size):
    keys = iter(jax.random.split(key, 64))

    def w(shape, scale=0.1):
        return (scale * jax.random.normal(next(keys), shape)).astype(jnp.float32)

    params = dict(
        tw1=w((9, 64)), tb1=w((1, 64)), tw2=w((64, 64)), tb2=w((1, 64)),
        sw1=w((9, 64)), sb1=w((1, 64)), sw2=w((64, 64)), sb2=w((1, 64)),
    )
    n_layers = calculate_num_p_layers(window_size)
    layers = []
    in_ch = 9
    for i in range(n_layers):
        out_ch = 64 if i < n_layers - 1 else 576
        layers.append(dict(
            dw_w=w((3, in_ch)),        # depthwise Conv1d weight (C,1,3) -> (3,C)
            dw_b=w((1, in_ch)),
            pw_w=w((in_ch, out_ch)),   # pointwise Conv1d weight (Cout,Cin,1) -> (Cin,Cout)
            pw_b=w((1, out_ch)),
        ))
        in_ch = out_ch
    params["p_layers"] = layers
    return params


def pack_params(params):
    """One-time packing of the kernel operand set (hoisted out of the forward)."""
    f32, bf16 = jnp.float32, jnp.bfloat16

    z9, z64 = jnp.zeros((9, 64), f32), jnp.zeros((64, 64), f32)
    fc_w1 = jnp.concatenate(
        [jnp.concatenate([params["tw1"], z9], axis=1),
         jnp.concatenate([z9, params["sw1"]], axis=1)], axis=0).astype(bf16)
    fc_w2 = jnp.concatenate(
        [jnp.concatenate([params["tw2"], z64], axis=1),
         jnp.concatenate([z64, params["sw2"]], axis=1)], axis=0).astype(bf16)
    fc_b = jnp.concatenate(
        [jnp.concatenate([params["tb1"], params["sb1"]], axis=1),
         jnp.concatenate([params["tb2"], params["sb2"]], axis=1)], axis=0)

    layers = params["p_layers"]
    n_layers = len(layers)
    dw_pack = np.zeros((4, 128 * n_layers), np.float32)
    layer_cfgs, pw_ws = [], []
    co_off = 0
    for i, lp in enumerate(layers):
        c_in, c_out = lp["pw_w"].shape
        assert c_in <= 128, "depthwise packing assumes c_in <= 128"
        pool = i < n_layers - 1
        ci_off = 128 * i
        dw_pack[0:3, ci_off:ci_off + c_in] = np.asarray(lp["dw_w"])
        dw_pack[3:4, ci_off:ci_off + c_in] = np.asarray(lp["dw_b"])
        pw_ws.append(lp["pw_w"].astype(bf16))
        layer_cfgs.append((int(c_in), int(c_out), pool, ci_off, co_off))
        co_off += ((c_out + 127) // 128) * 128
    pwb_pack = np.zeros((1, max(co_off, 128)), np.float32)
    for (c_in, c_out, pool, ci, co), lp in zip(layer_cfgs, layers):
        pwb_pack[0, co:co + c_out] = np.asarray(lp["pw_b"])[0]
    scr_cols = max([c[1] for c in layer_cfgs if c[2]], default=8)
    return dict(fc_w1=fc_w1, fc_w2=fc_w2, fc_b=fc_b,
                dw_pack=jnp.asarray(dw_pack), pwb_pack=jnp.asarray(pwb_pack),
                pw_ws=tuple(pw_ws), layer_cfgs=tuple(layer_cfgs),
                scr_cols=scr_cols)


# ---------------------------------------------------------------------------
# Forward pass: one fused pallas_call
# ---------------------------------------------------------------------------
def encoder_forward(t, p, s, packed):
    B, L0, c0 = p.shape
    layer_cfgs = packed["layer_cfgs"]

    # Supported-layout checks (hold for the standard power-of-two windows).
    L = L0
    for (_, _, pool, _, _) in layer_cfgs:
        # TODO(synk): non-power-of-two window sizes need a host-precomputed
        # boundary-mask operand instead of the in-kernel bitwise-AND iota.
        assert _is_pow2(L), "in-kernel boundary masks assume power-of-two seq len"
        assert (B * L) % 8 == 0, "tokens-major layout needs sublane-aligned B*L"
        if pool:
            L //= 2

    p_dim = layer_cfgs[-1][1]
    out_dim = 64 + p_dim + 64
    # Tokens-major layout: (B, L, 9) -> (B*L, 9) (same data as PyTorch's NCL
    # view after permute(0,2,1), indexed tokens-first for lane density).
    p2 = p.reshape(B * L0, c0)

    kernel = functools.partial(_encoder_kernel, B=B, L0=L0,
                               layer_cfgs=layer_cfgs)
    vmem = pl.BlockSpec(memory_space=pltpu.MemorySpace.VMEM)
    operands = (t, s, p2,
                packed["fc_w1"], packed["fc_w2"], packed["fc_b"],
                packed["dw_pack"], packed["pwb_pack"], *packed["pw_ws"])

    # grid=() on purpose at small batch; for large B add a batch grid with
    # dimension_semantics=("parallel",) so v7x's second TensorCore is used.
    return pl.pallas_call(
        kernel,
        out_shape=jax.ShapeDtypeStruct((B, out_dim), jnp.float32),
        in_specs=[vmem] * len(operands),
        out_specs=vmem,
        scratch_shapes=[pltpu.VMEM((B * L0, packed["scr_cols"]), jnp.float32)],
    )(*operands)


if __name__ == "__main__":
    B = 2
    WINDOW = 64  # calculate_num_p_layers(64) == 3 separable-conv layers

    key = jax.random.PRNGKey(0)
    k_t, k_s, k_p, k_par = jax.random.split(key, 4)
    t = jax.random.normal(k_t, (B, 9), jnp.float32)
    s = jax.random.normal(k_s, (B, 9), jnp.float32)
    p = jax.random.normal(k_p, (B, WINDOW, 9), jnp.float32)

    params = init_params(k_par, WINDOW)
    packed = pack_params(params)

    h = encoder_forward(t, p, s, packed)
    h = jax.block_until_ready(h)
    assert h.shape == (B, 64 + 576 + 64), h.shape
    assert h.dtype == jnp.float32
    print("KERNEL_OK")
</pallas_src>

<mosaic_0001>
module attributes {stable_mosaic.version = 11 : i64} {
  func.func @_encoder_kernel(%arg0: memref<2x9xf32, #tpu.memory_space<vmem>>, %arg1: memref<2x9xf32, #tpu.memory_space<vmem>>, %arg2: memref<128x9xf32, #tpu.memory_space<vmem>>, %arg3: memref<18x128xbf16, #tpu.memory_space<vmem>>, %arg4: memref<128x128xbf16, #tpu.memory_space<vmem>>, %arg5: memref<2x128xf32, #tpu.memory_space<vmem>>, %arg6: memref<4x384xf32, #tpu.memory_space<vmem>>, %arg7: memref<1x896xf32, #tpu.memory_space<vmem>>, %arg8: memref<9x64xbf16, #tpu.memory_space<vmem>>, %arg9: memref<64x64xbf16, #tpu.memory_space<vmem>>, %arg10: memref<64x576xbf16, #tpu.memory_space<vmem>>, %arg11: memref<2x704xf32, #tpu.memory_space<vmem>>, %arg12: memref<128x64xf32, #tpu.memory_space<vmem>>) attributes {dimension_semantics = [], scalar_prefetch = 0 : i64, scratch_operands = 1 : i64, tpu.core_type = #tpu.core_type<tc>} {
    %cst = arith.constant 0.000000e+00 : f32
    %0 = vector.broadcast %cst : f32 to vector<2x9xf32>
    %c0 = arith.constant 0 : index
    %c0_0 = arith.constant 0 : index
    %1 = vector.load %arg0[%c0, %c0_0] : memref<2x9xf32, #tpu.memory_space<vmem>>, vector<2x9xf32>
    %2 = tpu.concatenate %1, %0 in 1 : vector<2x9xf32>, vector<2x9xf32> -> vector<2x18xf32>
    %c0_1 = arith.constant 0 : index
    %c0_2 = arith.constant 0 : index
    %3 = vector.load %arg1[%c0_1, %c0_2] : memref<2x9xf32, #tpu.memory_space<vmem>>, vector<2x9xf32>
    %4 = tpu.concatenate %0, %3 in 1 : vector<2x9xf32>, vector<2x9xf32> -> vector<2x18xf32>
    %5 = tpu.concatenate %2, %4 in 0 : vector<2x18xf32>, vector<2x18xf32> -> vector<4x18xf32>
    %6 = arith.truncf %5 : vector<4x18xf32> to vector<4x18xbf16>
    %c0_3 = arith.constant 0 : index
    %c0_4 = arith.constant 0 : index
    %7 = vector.load %arg3[%c0_3, %c0_4] : memref<18x128xbf16, #tpu.memory_space<vmem>>, vector<18x128xbf16>
    %cst_5 = arith.constant dense<0.000000e+00> : vector<4x128xf32>
    %8 = tpu.matmul %6, %7, %cst_5 {dimension_numbers = #tpu.dot_dimension_numbers<[1], [0], [0], [1], [0, 0, 1, 1], [], []>} : vector<4x18xbf16>, vector<18x128xbf16>, vector<4x128xf32> -> vector<4x128xf32>
    %c0_6 = arith.constant 0 : index
    %c0_7 = arith.constant 0 : index
    %9 = vector.load %arg5[%c0_6, %c0_7] : memref<2x128xf32, #tpu.memory_space<vmem>>, vector<1x128xf32>
    %10 = vector.broadcast %9 : vector<1x128xf32> to vector<4x128xf32>
    %11 = arith.addf %8, %10 : vector<4x128xf32>
    %cst_8 = arith.constant 0.000000e+00 : f32
    %12 = vector.broadcast %cst_8 : f32 to vector<4x128xf32>
    %13 = arith.maximumf %11, %12 : vector<4x128xf32>
    %14 = arith.truncf %13 : vector<4x128xf32> to vector<4x128xbf16>
    %c0_9 = arith.constant 0 : index
    %c0_10 = arith.constant 0 : index
    %15 = vector.load %arg4[%c0_9, %c0_10] : memref<128x128xbf16, #tpu.memory_space<vmem>>, vector<128x128xbf16>
    %cst_11 = arith.constant dense<0.000000e+00> : vector<4x128xf32>
    %16 = tpu.matmul %14, %15, %cst_11 {dimension_numbers = #tpu.dot_dimension_numbers<[1], [0], [0], [1], [0, 0, 1, 1], [], []>} : vector<4x128xbf16>, vector<128x128xbf16>, vector<4x128xf32> -> vector<4x128xf32>
    %c1 = arith.constant 1 : index
    %c0_12 = arith.constant 0 : index
    %17 = vector.load %arg5[%c1, %c0_12] : memref<2x128xf32, #tpu.memory_space<vmem>>, vector<1x128xf32>
    %18 = vector.broadcast %17 : vector<1x128xf32> to vector<4x128xf32>
    %19 = arith.addf %16, %18 : vector<4x128xf32>
    %cst_13 = arith.constant 0.000000e+00 : f32
    %20 = vector.broadcast %cst_13 : f32 to vector<4x128xf32>
    %21 = arith.maximumf %19, %20 : vector<4x128xf32>
    %22 = vector.extract_strided_slice %21 {offsets = [0, 0], sizes = [2, 64], strides = [1, 1]} : vector<4x128xf32> to vector<2x64xf32>
    %23 = vector.extract_strided_slice %21 {offsets = [2, 64], sizes = [2, 64], strides = [1, 1]} : vector<4x128xf32> to vector<2x64xf32>
    %c0_14 = arith.constant 0 : index
    %c0_15 = arith.constant 0 : index
    %24 = vector.load %arg2[%c0_14, %c0_15] : memref<128x9xf32, #tpu.memory_space<vmem>>, vector<128x9xf32>
    %25 = tpu.iota {dimensions = array<i32: 0>} : vector<128x1xi32>
    %c63_i32 = arith.constant 63 : i32
    %26 = vector.broadcast %c63_i32 : i32 to vector<128x1xi32>
    %27 = arith.andi %25, %26 : vector<128x1xi32>
    %c0_i32 = arith.constant 0 : i32
    %28 = vector.broadcast %c0_i32 : i32 to vector<128x1xi32>
    %29 = arith.cmpi eq, %27, %28 : vector<128x1xi32>
    %c1_i32 = arith.constant 1 : i32
    %30 = tpu.dynamic_rotate %24 by %c1_i32 dim 0 : vector<128x9xf32>, i32 -> vector<128x9xf32>
    %cst_16 = arith.constant 0.000000e+00 : f32
    %31 = vector.shape_cast %29 : vector<128x1xi1> to vector<128x1xi1>
    %32 = vector.broadcast %31 : vector<128x1xi1> to vector<128x9xi1>
    %33 = vector.broadcast %cst_16 : f32 to vector<128x9xf32>
    %34 = arith.select %32, %33, %30 : vector<128x9xi1>, vector<128x9xf32>
    %c63_i32_17 = arith.constant 63 : i32
    %35 = vector.broadcast %c63_i32_17 : i32 to vector<128x1xi32>
    %36 = arith.cmpi eq, %27, %35 : vector<128x1xi32>
    %c127_i32 = arith.constant 127 : i32
    %37 = tpu.dynamic_rotate %24 by %c127_i32 dim 0 : vector<128x9xf32>, i32 -> vector<128x9xf32>
    %cst_18 = arith.constant 0.000000e+00 : f32
    %38 = vector.shape_cast %36 : vector<128x1xi1> to vector<128x1xi1>
    %39 = vector.broadcast %38 : vector<128x1xi1> to vector<128x9xi1>
    %40 = vector.broadcast %cst_18 : f32 to vector<128x9xf32>
    %41 = arith.select %39, %40, %37 : vector<128x9xi1>, vector<128x9xf32>
    %c0_19 = arith.constant 0 : index
    %c0_20 = arith.constant 0 : index
    %42 = vector.load %arg6[%c0_19, %c0_20] : memref<4x384xf32, #tpu.memory_space<vmem>>, vector<1x9xf32>
    %43 = vector.broadcast %42 : vector<1x9xf32> to vector<128x9xf32>
    %44 = arith.mulf %34, %43 : vector<128x9xf32>
    %c1_21 = arith.constant 1 : index
    %c0_22 = arith.constant 0 : index
    %45 = vector.load %arg6[%c1_21, %c0_22] : memref<4x384xf32, #tpu.memory_space<vmem>>, vector<1x9xf32>
    %46 = vector.broadcast %45 : vector<1x9xf32> to vector<128x9xf32>
    %47 = arith.mulf %24, %46 : vector<128x9xf32>
    %48 = arith.addf %44, %47 : vector<128x9xf32>
    %c2 = arith.constant 2 : index
    %c0_23 = arith.constant 0 : index
    %49 = vector.load %arg6[%c2, %c0_23] : memref<4x384xf32, #tpu.memory_space<vmem>>, vector<1x9xf32>
    %50 = vector.broadcast %49 : vector<1x9xf32> to vector<128x9xf32>
    %51 = arith.mulf %41, %50 : vector<128x9xf32>
    %52 = arith.addf %48, %51 : vector<128x9xf32>
    %c3 = arith.constant 3 : index
    %c0_24 = arith.constant 0 : index
    %53 = vector.load %arg6[%c3, %c0_24] : memref<4x384xf32, #tpu.memory_space<vmem>>, vector<1x9xf32>
    %54 = vector.broadcast %53 : vector<1x9xf32> to vector<128x9xf32>
    %55 = arith.addf %52, %54 : vector<128x9xf32>
    %56 = arith.truncf %55 : vector<128x9xf32> to vector<128x9xbf16>
    %c0_25 = arith.constant 0 : index
    %c0_26 = arith.constant 0 : index
    %57 = vector.load %arg8[%c0_25, %c0_26] : memref<9x64xbf16, #tpu.memory_space<vmem>>, vector<9x64xbf16>
    %cst_27 = arith.constant dense<0.000000e+00> : vector<128x64xf32>
    %58 = tpu.matmul %56, %57, %cst_27 {dimension_numbers = #tpu.dot_dimension_numbers<[1], [0], [0], [1], [0, 0, 1, 1], [], []>} : vector<128x9xbf16>, vector<9x64xbf16>, vector<128x64xf32> -> vector<128x64xf32>
    %c0_28 = arith.constant 0 : index
    %c0_29 = arith.constant 0 : index
    %59 = vector.load %arg7[%c0_28, %c0_29] : memref<1x896xf32, #tpu.memory_space<vmem>>, vector<1x64xf32>
    %60 = vector.broadcast %59 : vector<1x64xf32> to vector<128x64xf32>
    %61 = arith.addf %58, %60 : vector<128x64xf32>
    %cst_30 = arith.constant 0.000000e+00 : f32
    %62 = vector.broadcast %cst_30 : f32 to vector<128x64xf32>
    %63 = arith.maximumf %61, %62 : vector<128x64xf32>
    %c127_i32_31 = arith.constant 127 : i32
    %64 = tpu.dynamic_rotate %63 by %c127_i32_31 dim 0 : vector<128x64xf32>, i32 -> vector<128x64xf32>
    %65 = arith.maximumf %63, %64 : vector<128x64xf32>
    %c0_32 = arith.constant 0 : index
    %c0_33 = arith.constant 0 : index
    %66 = vector.load %arg12[%c0_32, %c0_33] : memref<128x64xf32, #tpu.memory_space<vmem>>, vector<128x64xf32>
    tpu.vector_store %arg12[%c0_32, %c0_33], %65 {strides = array<i32>} : memref<128x64xf32, #tpu.memory_space<vmem>>, vector<128x64xf32>,
    %c0_34 = arith.constant 0 : index
    %c0_35 = arith.constant 0 : index
    %67 = tpu.strided_load %arg12[%c0_34, %c0_35] {strides = array<i32: 2, 1>} : memref<128x64xf32, #tpu.memory_space<vmem>>, vector<64x64xf32>
    %68 = tpu.iota {dimensions = array<i32: 0>} : vector<64x1xi32>
    %c31_i32 = arith.constant 31 : i32
    %69 = vector.broadcast %c31_i32 : i32 to vector<64x1xi32>
    %70 = arith.andi %68, %69 : vector<64x1xi32>
    %c0_i32_36 = arith.constant 0 : i32
    %71 = vector.broadcast %c0_i32_36 : i32 to vector<64x1xi32>
    %72 = arith.cmpi eq, %70, %71 : vector<64x1xi32>
    %c1_i32_37 = arith.constant 1 : i32
    %73 = tpu.dynamic_rotate %67 by %c1_i32_37 dim 0 : vector<64x64xf32>, i32 -> vector<64x64xf32>
    %cst_38 = arith.constant 0.000000e+00 : f32
    %74 = vector.shape_cast %72 : vector<64x1xi1> to vector<64x1xi1>
    %75 = vector.broadcast %74 : vector<64x1xi1> to vector<64x64xi1>
    %76 = vector.broadcast %cst_38 : f32 to vector<64x64xf32>
    %77 = arith.select %75, %76, %73 : vector<64x64xi1>, vector<64x64xf32>
    %c31_i32_39 = arith.constant 31 : i32
    %78 = vector.broadcast %c31_i32_39 : i32 to vector<64x1xi32>
    %79 = arith.cmpi eq, %70, %78 : vector<64x1xi32>
    %c63_i32_40 = arith.constant 63 : i32
    %80 = tpu.dynamic_rotate %67 by %c63_i32_40 dim 0 : vector<64x64xf32>, i32 -> vector<64x64xf32>
    %cst_41 = arith.constant 0.000000e+00 : f32
    %81 = vector.shape_cast %79 : vector<64x1xi1> to vector<64x1xi1>
    %82 = vector.broadcast %81 : vector<64x1xi1> to vector<64x64xi1>
    %83 = vector.broadcast %cst_41 : f32 to vector<64x64xf32>
    %84 = arith.select %82, %83, %80 : vector<64x64xi1>, vector<64x64xf32>
    %c0_42 = arith.constant 0 : index
    %c128 = arith.constant 128 : index
    %85 = vector.load %arg6[%c0_42, %c128] : memref<4x384xf32, #tpu.memory_space<vmem>>, vector<1x64xf32>
    %86 = vector.broadcast %85 : vector<1x64xf32> to vector<64x64xf32>
    %87 = arith.mulf %77, %86 : vector<64x64xf32>
    %c1_43 = arith.constant 1 : index
    %c128_44 = arith.constant 128 : index
    %88 = vector.load %arg6[%c1_43, %c128_44] : memref<4x384xf32, #tpu.memory_space<vmem>>, vector<1x64xf32>
    %89 = vector.broadcast %88 : vector<1x64xf32> to vector<64x64xf32>
    %90 = arith.mulf %67, %89 : vector<64x64xf32>
    %91 = arith.addf %87, %90 : vector<64x64xf32>
    %c2_45 = arith.constant 2 : index
    %c128_46 = arith.constant 128 : index
    %92 = vector.load %arg6[%c2_45, %c128_46] : memref<4x384xf32, #tpu.memory_space<vmem>>, vector<1x64xf32>
    %93 = vector.broadcast %92 : vector<1x64xf32> to vector<64x64xf32>
    %94 = arith.mulf %84, %93 : vector<64x64xf32>
    %95 = arith.addf %91, %94 : vector<64x64xf32>
    %c3_47 = arith.constant 3 : index
    %c128_48 = arith.constant 128 : index
    %96 = vector.load %arg6[%c3_47, %c128_48] : memref<4x384xf32, #tpu.memory_space<vmem>>, vector<1x64xf32>
    %97 = vector.broadcast %96 : vector<1x64xf32> to vector<64x64xf32>
    %98 = arith.addf %95, %97 : vector<64x64xf32>
    %99 = arith.truncf %98 : vector<64x64xf32> to vector<64x64xbf16>
    %c0_49 = arith.constant 0 : index
    %c0_50 = arith.constant 0 : index
    %100 = vector.load %arg9[%c0_49, %c0_50] : memref<64x64xbf16, #tpu.memory_space<vmem>>, vector<64x64xbf16>
    %cst_51 = arith.constant dense<0.000000e+00> : vector<64x64xf32>
    %101 = tpu.matmul %99, %100, %cst_51 {dimension_numbers = #tpu.dot_dimension_numbers<[1], [0], [0], [1], [0, 0, 1, 1], [], []>} : vector<64x64xbf16>, vector<64x64xbf16>, vector<64x64xf32> -> vector<64x64xf32>
    %c0_52 = arith.constant 0 : index
    %c128_53 = arith.constant 128 : index
    %102 = vector.load %arg7[%c0_52, %c128_53] : memref<1x896xf32, #tpu.memory_space<vmem>>, vector<1x64xf32>
    %103 = vector.broadcast %102 : vector<1x64xf32> to vector<64x64xf32>
    %104 = arith.addf %101, %103 : vector<64x64xf32>
    %cst_54 = arith.constant 0.000000e+00 : f32
    %105 = vector.broadcast %cst_54 : f32 to vector<64x64xf32>
    %106 = arith.maximumf %104, %105 : vector<64x64xf32>
    %c63_i32_55 = arith.constant 63 : i32
    %107 = tpu.dynamic_rotate %106 by %c63_i32_55 dim 0 : vector<64x64xf32>, i32 -> vector<64x64xf32>
    %108 = arith.maximumf %106, %107 : vector<64x64xf32>
    %c0_56 = arith.constant 0 : index
    %c0_57 = arith.constant 0 : index
    %109 = vector.load %arg12[%c0_56, %c0_57] : memref<128x64xf32, #tpu.memory_space<vmem>>, vector<64x64xf32>
    tpu.vector_store %arg12[%c0_56, %c0_57], %108 {strides = array<i32>} : memref<128x64xf32, #tpu.memory_space<vmem>>, vector<64x64xf32>,
    %c0_58 = arith.constant 0 : index
    %c0_59 = arith.constant 0 : index
    %110 = tpu.strided_load %arg12[%c0_58, %c0_59] {strides = array<i32: 2, 1>} : memref<128x64xf32, #tpu.memory_space<vmem>>, vector<32x64xf32>
    %111 = tpu.iota {dimensions = array<i32: 0>} : vector<32x1xi32>
    %c15_i32 = arith.constant 15 : i32
    %112 = vector.broadcast %c15_i32 : i32 to vector<32x1xi32>
    %113 = arith.andi %111, %112 : vector<32x1xi32>
    %c0_i32_60 = arith.constant 0 : i32
    %114 = vector.broadcast %c0_i32_60 : i32 to vector<32x1xi32>
    %115 = arith.cmpi eq, %113, %114 : vector<32x1xi32>
    %c1_i32_61 = arith.constant 1 : i32
    %116 = tpu.dynamic_rotate %110 by %c1_i32_61 dim 0 : vector<32x64xf32>, i32 -> vector<32x64xf32>
    %cst_62 = arith.constant 0.000000e+00 : f32
    %117 = vector.shape_cast %115 : vector<32x1xi1> to vector<32x1xi1>
    %118 = vector.broadcast %117 : vector<32x1xi1> to vector<32x64xi1>
    %119 = vector.broadcast %cst_62 : f32 to vector<32x64xf32>
    %120 = arith.select %118, %119, %116 : vector<32x64xi1>, vector<32x64xf32>
    %c15_i32_63 = arith.constant 15 : i32
    %121 = vector.broadcast %c15_i32_63 : i32 to vector<32x1xi32>
    %122 = arith.cmpi eq, %113, %121 : vector<32x1xi32>
    %c31_i32_64 = arith.constant 31 : i32
    %123 = tpu.dynamic_rotate %110 by %c31_i32_64 dim 0 : vector<32x64xf32>, i32 -> vector<32x64xf32>
    %cst_65 = arith.constant 0.000000e+00 : f32
    %124 = vector.shape_cast %122 : vector<32x1xi1> to vector<32x1xi1>
    %125 = vector.broadcast %124 : vector<32x1xi1> to vector<32x64xi1>
    %126 = vector.broadcast %cst_65 : f32 to vector<32x64xf32>
    %127 = arith.select %125, %126, %123 : vector<32x64xi1>, vector<32x64xf32>
    %c0_66 = arith.constant 0 : index
    %c256 = arith.constant 256 : index
    %128 = vector.load %arg6[%c0_66, %c256] : memref<4x384xf32, #tpu.memory_space<vmem>>, vector<1x64xf32>
    %129 = vector.broadcast %128 : vector<1x64xf32> to vector<32x64xf32>
    %130 = arith.mulf %120, %129 : vector<32x64xf32>
    %c1_67 = arith.constant 1 : index
    %c256_68 = arith.constant 256 : index
    %131 = vector.load %arg6[%c1_67, %c256_68] : memref<4x384xf32, #tpu.memory_space<vmem>>, vector<1x64xf32>
    %132 = vector.broadcast %131 : vector<1x64xf32> to vector<32x64xf32>
    %133 = arith.mulf %110, %132 : vector<32x64xf32>
    %134 = arith.addf %130, %133 : vector<32x64xf32>
    %c2_69 = arith.constant 2 : index
    %c256_70 = arith.constant 256 : index
    %135 = vector.load %arg6[%c2_69, %c256_70] : memref<4x384xf32, #tpu.memory_space<vmem>>, vector<1x64xf32>
    %136 = vector.broadcast %135 : vector<1x64xf32> to vector<32x64xf32>
    %137 = arith.mulf %127, %136 : vector<32x64xf32>
    %138 = arith.addf %134, %137 : vector<32x64xf32>
    %c3_71 = arith.constant 3 : index
    %c256_72 = arith.constant 256 : index
    %139 = vector.load %arg6[%c3_71, %c256_72] : memref<4x384xf32, #tpu.memory_space<vmem>>, vector<1x64xf32>
    %140 = vector.broadcast %139 : vector<1x64xf32> to vector<32x64xf32>
    %141 = arith.addf %138, %140 : vector<32x64xf32>
    %142 = arith.truncf %141 : vector<32x64xf32> to vector<32x64xbf16>
    %c0_73 = arith.constant 0 : index
    %c0_74 = arith.constant 0 : index
    %143 = vector.load %arg10[%c0_73, %c0_74] : memref<64x576xbf16, #tpu.memory_space<vmem>>, vector<64x576xbf16>
    %cst_75 = arith.constant dense<0.000000e+00> : vector<32x576xf32>
    %144 = tpu.matmul %142, %143, %cst_75 {dimension_numbers = #tpu.dot_dimension_numbers<[1], [0], [0], [1], [0, 0, 1, 1], [], []>} : vector<32x64xbf16>, vector<64x576xbf16>, vector<32x576xf32> -> vector<32x576xf32>
    %c0_76 = arith.constant 0 : index
    %c256_77 = arith.constant 256 : index
    %145 = vector.load %arg7[%c0_76, %c256_77] : memref<1x896xf32, #tpu.memory_space<vmem>>, vector<1x576xf32>
    %146 = vector.broadcast %145 : vector<1x576xf32> to vector<32x576xf32>
    %147 = arith.addf %144, %146 : vector<32x576xf32>
    %148 = vector.shape_cast %147 : vector<32x576xf32> to vector<2x16x576xf32>
    %cst_78 = arith.constant dense<0xFF800000> : vector<2x576xf32>
    %149 = vector.multi_reduction <maximumf>, %148, %cst_78 [1] : vector<2x16x576xf32> to vector<2x576xf32>
    %c0_79 = arith.constant 0 : index
    %c0_80 = arith.constant 0 : index
    %150 = vector.load %arg11[%c0_79, %c0_80] : memref<2x704xf32, #tpu.memory_space<vmem>>, vector<2x64xf32>
    tpu.vector_store %arg11[%c0_79, %c0_80], %22 {strides = array<i32>} : memref<2x704xf32, #tpu.memory_space<vmem>>, vector<2x64xf32>,
    %c0_81 = arith.constant 0 : index
    %c64 = arith.constant 64 : index
    %151 = vector.load %arg11[%c0_81, %c64] : memref<2x704xf32, #tpu.memory_space<vmem>>, vector<2x576xf32>
    tpu.vector_store %arg11[%c0_81, %c64], %149 {strides = array<i32>} : memref<2x704xf32, #tpu.memory_space<vmem>>, vector<2x576xf32>,
    %c0_82 = arith.constant 0 : index
    %c640 = arith.constant 640 : index
    %152 = vector.load %arg11[%c0_82, %c640] : memref<2x704xf32, #tpu.memory_space<vmem>>, vector<2x64xf32>
    tpu.vector_store %arg11[%c0_82, %c640], %23 {strides = array<i32>} : memref<2x704xf32, #tpu.memory_space<vmem>>, vector<2x64xf32>,
    return
  }
}

</mosaic_0001>

<llo_original>
// kernel: tpu_custom_call.1
$region0: #{tpu_custom_call.1}
  #allocation0 [shape = 'u32[]', space=smem, size = 0x4, offset = 0x4, fixed_abs, tag = 'smem constant byte address 0x4 - core index']
  #allocation1 [shape = 'u32[144,128]{1,0:T(1,128)}', space=vmem, size = 0x12000, scoped, tag = 'internal scratch']
  #allocation2 [shape = 'f32[128,64]{1,0:T(8,128)}', space=vmem, size = 0x10000, scoped, tag = 'scratch operand']
  %s0 = inlined_call_operand.hbm [shape: f32[2,9], index: 0, kind: input, shape index: {}]
  %s1 = inlined_call_operand.hbm [shape: f32[2,9], index: 1, kind: input, shape index: {}]
  %s2 = inlined_call_operand.vmem [shape: f32[128,9], index: 2, kind: input, shape index: {}]
  %s3 = inlined_call_operand.vmem [shape: bf16[18,128], index: 3, kind: input, shape index: {}]
  %s4 = inlined_call_operand.hbm [shape: bf16[128,128], index: 4, kind: input, shape index: {}]
  %s5 = inlined_call_operand.hbm [shape: f32[2,128], index: 5, kind: input, shape index: {}]
  %s6 = inlined_call_operand.hbm [shape: f32[4,384], index: 6, kind: input, shape index: {}]
  %s7 = inlined_call_operand.hbm [shape: f32[1,896], index: 7, kind: input, shape index: {}]
  %s8 = inlined_call_operand.vmem [shape: bf16[9,64], index: 8, kind: input, shape index: {}]
  %s9 = inlined_call_operand.hbm [shape: bf16[64,64], index: 9, kind: input, shape index: {}]
  %s10 = inlined_call_operand.vmem [shape: bf16[64,576], index: 10, kind: input, shape index: {}]
  %s11 = inlined_call_operand.hbm [shape: f32[2,704], index: 11, kind: output, shape index: {}]
  %s12 = sld [smem:[#allocation0]]
  $region82: #{tpu_custom_call.1} parent=0
    _
  %s14 = ssub.s32 1, %s12
  %s15 = scalar_select 0, %s14, %s12
  $region1: #{tpu_custom_call.1} parent=0
    #allocation3 [shape = 'u8[1024]{0}', space=vmem, size = 0x400, scoped, tag = 'input window, operand 0, single buffered']
    #allocation4 [shape = 's32[1]{0}', space=sflag, size = 0x4, scoped, tag = 'scoped memory for tpu_custom_call.1']
    #allocation5 [shape = 's32[1]{0}', space=sflag, size = 0x4, scoped, tag = 'scoped memory for tpu_custom_call.1']
    #allocation6 [shape = 'u8[1024]{0}', space=vmem, size = 0x400, scoped, tag = 'input window, operand 1, single buffered']
    #allocation7 [shape = 's32[1]{0}', space=sflag, size = 0x4, scoped, tag = 'scoped memory for tpu_custom_call.1']
    #allocation8 [shape = 'u8[32768]{0}', space=vmem, size = 0x8000, scoped, tag = 'input window, operand 4, single buffered']
    #allocation9 [shape = 'u8[1024]{0}', space=vmem, size = 0x400, scoped, tag = 'input window, operand 5, single buffered']
    #allocation10 [shape = 's32[1]{0}', space=sflag, size = 0x4, scoped, tag = 'scoped memory for tpu_custom_call.1']
    #allocation11 [shape = 'u8[6144]{0}', space=vmem, size = 0x1800, scoped, tag = 'input window, operand 6, single buffered']
    #allocation12 [shape = 'u8[3584]{0}', space=vmem, size = 0x1000, scoped, tag = 'input window, operand 7, single buffered']
    #allocation13 [shape = 's32[1]{0}', space=sflag, size = 0x4, scoped, tag = 'scoped memory for tpu_custom_call.1']
    #allocation14 [shape = 'u8[16384]{0}', space=vmem, size = 0x4000, scoped, tag = 'input window, operand 9, single buffered']
    #allocation15 [shape = 'u8[6144]{0}', space=vmem, size = 0x1800, scoped, tag = 'output window, operand 0, single buffered']
    %16 = vsyncpa [#allocation4], 0
    %17 = vsyncpa [#allocation7], 0
    %18 = vsyncpa [#allocation10], 0
    %19 = vsyncpa [#allocation13], 0
    %20 = vsyncpa [#allocation5], 0
    // Predicated region
    $region2: #{tpu_custom_call.1} parent=1 // pred_check
      _
    $region3: #{tpu_custom_call.1} parent=1 // pred_check_branch
      %22 = sbr.rel (0) target = $region5
    $region4: #{tpu_custom_call.1} parent=1 // pred_region
      %s24 = ssub.s32 32, 32
      %25 = vsyncadd [#allocation4], %s24
      %s27 = sshll.u32 [#allocation3], 4
      %s28 = int_to_ptr.vmem [resolvable:$true] %s27
      %30 = dma.hbm_to_vmem [thread:$0]  %s0, 32, %s28, [#allocation4]
    $region5: #{tpu_custom_call.1} parent=1 // pred_fallthru
      _
    // Predicated region
    $region6: #{tpu_custom_call.1} parent=1 // pred_check
      _
    $region7: #{tpu_custom_call.1} parent=1 // pred_check_branch
      %32 = sbr.rel (0) target = $region9
    $region8: #{tpu_custom_call.1} parent=1 // pred_region
      %s34 = ssub.s32 32, 32
      %35 = vsyncadd [#allocation7], %s34
      %s37 = sshll.u32 [#allocation6], 4
      %s38 = int_to_ptr.vmem [resolvable:$true] %s37
      %40 = dma.hbm_to_vmem [thread:$0]  %s1, 32, %s38, [#allocation7]
    $region9: #{tpu_custom_call.1} parent=1 // pred_fallthru
      _
    // Predicated region
    $region10: #{tpu_custom_call.1} parent=1 // pred_check
      _
    $region11: #{tpu_custom_call.1} parent=1 // pred_check_branch
      %42 = sbr.rel (0) target = $region13
    $region12: #{tpu_custom_call.1} parent=1 // pred_region
      _
    $region13: #{tpu_custom_call.1} parent=1 // pred_fallthru
      _
    // Predicated region
    $region14: #{tpu_custom_call.1} parent=1 // pred_check
      _
    $region15: #{tpu_custom_call.1} parent=1 // pred_check_branch
      %44 = sbr.rel (0) target = $region17
    $region16: #{tpu_custom_call.1} parent=1 // pred_region
      _
    $region17: #{tpu_custom_call.1} parent=1 // pred_fallthru
      _
    // Predicated region
    $region18: #{tpu_custom_call.1} parent=1 // pred_check
      _
    $region19: #{tpu_custom_call.1} parent=1 // pred_check_branch
      %46 = sbr.rel (0) target = $region21
    $region20: #{tpu_custom_call.1} parent=1 // pred_region
      %s48 = ssub.s32 1024, 1024
      %49 = vsyncadd [#allocation7], %s48
      %s50 = sshll.u32 [#allocation8], 4
      %s51 = int_to_ptr.vmem [resolvable:$true] %s50
      %56 = dma.hbm_to_vmem [thread:$0]  %s4, 1024, %s51, [#allocation7], 64, 64, 4
    $region21: #{tpu_custom_call.1} parent=1 // pred_fallthru
      _
    // Predicated region
    $region22: #{tpu_custom_call.1} parent=1 // pred_check
      _
    $region23: #{tpu_custom_call.1} parent=1 // pred_check_branch
      %58 = sbr.rel (0) target = $region25
    $region24: #{tpu_custom_call.1} parent=1 // pred_region
      %s60 = ssub.s32 32, 32
      %61 = vsyncadd [#allocation10], %s60
      %s63 = sshll.u32 [#allocation9], 4
      %s64 = int_to_ptr.vmem [resolvable:$true] %s63
      %66 = dma.hbm_to_vmem [thread:$0]  %s5, 32, %s64, [#allocation10]
    $region25: #{tpu_custom_call.1} parent=1 // pred_fallthru
      _
    // Predicated region
    $region26: #{tpu_custom_call.1} parent=1 // pred_check
      _
    $region27: #{tpu_custom_call.1} parent=1 // pred_check_branch
      %68 = sbr.rel (0) target = $region29
    $region28: #{tpu_custom_call.1} parent=1 // pred_region
      %s70 = ssub.s32 192, 192
      %71 = vsyncadd [#allocation10], %s70
      %s73 = sshll.u32 [#allocation11], 4
      %s74 = int_to_ptr.vmem [resolvable:$true] %s73
      %76 = dma.hbm_to_vmem [thread:$0]  %s6, 192, %s74, [#allocation10]
    $region29: #{tpu_custom_call.1} parent=1 // pred_fallthru
      _
    // Predicated region
    $region30: #{tpu_custom_call.1} parent=1 // pred_check
      _
    $region31: #{tpu_custom_call.1} parent=1 // pred_check_branch
      %78 = sbr.rel (0) target = $region33
    $region32: #{tpu_custom_call.1} parent=1 // pred_region
      %s80 = ssub.s32 112, 112
      %81 = vsyncadd [#allocation13], %s80
      %s83 = sshll.u32 [#allocation12], 4
      %s84 = int_to_ptr.vmem [resolvable:$true] %s83
      %86 = dma.hbm_to_vmem [thread:$0]  %s7, 112, %s84, [#allocation13]
    $region33: #{tpu_custom_call.1} parent=1 // pred_fallthru
      _
    // Predicated region
    $region34: #{tpu_custom_call.1} parent=1 // pred_check
      _
    $region35: #{tpu_custom_call.1} parent=1 // pred_check_branch
      %88 = sbr.rel (0) target = $region37
    $region36: #{tpu_custom_call.1} parent=1 // pred_region
      _
    $region37: #{tpu_custom_call.1} parent=1 // pred_fallthru
      _
    // Predicated region
    $region38: #{tpu_custom_call.1} parent=1 // pred_check
      _
    $region39: #{tpu_custom_call.1} parent=1 // pred_check_branch
      %90 = sbr.rel (0) target = $region41
    $region40: #{tpu_custom_call.1} parent=1 // pred_region
      %s92 = ssub.s32 512, 512
      %93 = vsyncadd [#allocation13], %s92
      %s94 = sshll.u32 [#allocation14], 4
      %s95 = int_to_ptr.vmem [resolvable:$true] %s94
      %100 = dma.hbm_to_vmem [thread:$0]  %s9, 512, %s95, [#allocation13], 64, 64, 4
    $region41: #{tpu_custom_call.1} parent=1 // pred_fallthru
      _
    // Predicated region
    $region42: #{tpu_custom_call.1} parent=1 // pred_check
      _
    $region43: #{tpu_custom_call.1} parent=1 // pred_check_branch
      %102 = sbr.rel (0) target = $region45
    $region44: #{tpu_custom_call.1} parent=1 // pred_region
      _
    $region45: #{tpu_custom_call.1} parent=1 // pred_fallthru
      _
    // Predicated region
    $region46: #{tpu_custom_call.1} parent=1 // pred_check
      _
    $region47: #{tpu_custom_call.1} parent=1 // pred_check_branch
      %104 = sbr.rel (0) target = $region49
    $region48: #{tpu_custom_call.1} parent=1 // pred_region
      %105 = dma.done [#allocation4], 32
    $region49: #{tpu_custom_call.1} parent=1 // pred_fallthru
      _
    // Predicated region
    $region50: #{tpu_custom_call.1} parent=1 // pred_check
      _
    $region51: #{tpu_custom_call.1} parent=1 // pred_check_branch
      %107 = sbr.rel (0) target = $region53
    $region52: #{tpu_custom_call.1} parent=1 // pred_region
      %108 = dma.done [#allocation7], 32
    $region53: #{tpu_custom_call.1} parent=1 // pred_fallthru
      _
    // Predicated region
    $region54: #{tpu_custom_call.1} parent=1 // pred_check
      _
    $region55: #{tpu_custom_call.1} parent=1 // pred_check_branch
      %110 = sbr.rel (0) target = $region57
    $region56: #{tpu_custom_call.1} parent=1 // pred_region
      %111 = dma.done [#allocation7], 1024
    $region57: #{tpu_custom_call.1} parent=1 // pred_fallthru
      _
    // Predicated region
    $region58: #{tpu_custom_call.1} parent=1 // pred_check
      _
    $region59: #{tpu_custom_call.1} parent=1 // pred_check_branch
      %113 = sbr.rel (0) target = $region61
    $region60: #{tpu_custom_call.1} parent=1 // pred_region
      %114 = dma.done [#allocation10], 32
    $region61: #{tpu_custom_call.1} parent=1 // pred_fallthru
      _
    // Predicated region
    $region62: #{tpu_custom_call.1} parent=1 // pred_check
      _
    $region63: #{tpu_custom_call.1} parent=1 // pred_check_branch
      %116 = sbr.rel (0) target = $region65
    $region64: #{tpu_custom_call.1} parent=1 // pred_region
      %117 = dma.done [#allocation10], 192
    $region65: #{tpu_custom_call.1} parent=1 // pred_fallthru
      _
    // Predicated region
    $region66: #{tpu_custom_call.1} parent=1 // pred_check
      _
    $region67: #{tpu_custom_call.1} parent=1 // pred_check_branch
      %119 = sbr.rel (0) target = $region69
    $region68: #{tpu_custom_call.1} parent=1 // pred_region
      %120 = dma.done [#allocation13], 112
    $region69: #{tpu_custom_call.1} parent=1 // pred_fallthru
      _
    // Predicated region
    $region70: #{tpu_custom_call.1} parent=1 // pred_check
      _
    $region71: #{tpu_custom_call.1} parent=1 // pred_check_branch
      %122 = sbr.rel (0) target = $region73
    $region72: #{tpu_custom_call.1} parent=1 // pred_region
      %123 = dma.done [#allocation13], 512
    $region73: #{tpu_custom_call.1} parent=1 // pred_fallthru
      _
    %v125 = vld [vmem:[#allocation3] sm:$0x3]
    %vm126 = vcmask 72704
    %v127 = vsel %vm126, %v125, 0.0
    %v128 = vld [vmem:[#allocation6] sm:$0x3]
    %130 = vrot.lane.b32.xlu0 %v128, 9
    %v131 = vpop.permute.xlu0 %130
    %v133 = vsel %vm126, 0.0, %v131
    %v135 = vrot.slane %v133, 6
    %vm137 = vcmask 1041408
    %v138 = vsel %vm137, %v127, %v135
    %v139 = vpack.c.bf16 %v138, %v138
    %v140 = vld [vmem:[%s3] sm:$0xf]
    %v141 = vld [vmem:[%s3 + $0x4] sm:$0xf]
    %v142 = vld [vmem:[%s3 + $0x8] sm:$0x1]
    %v143 = vld [vmem:[#allocation9] sm:$0x1]
    %v144 = vlaneseq
    %v145 = vshrl.u32 %v144, 7
    %v146 = vsub.s32 0, %v145
    %v147 = vrot.slane %v143, %v146
    %v151 = vunpack.c.l.b16 %v140
    %v152 = vunpack.c.l.b16 %v141
    %v153 = vunpack.c.l.b16 %v142
    %v154 = vpack.c.b16 %v152, %v151
    %v155 = vpack.c.b16 %v153, %v153
    %vm157 = vcmask 146432
    %v159 = vsel %vm157, %v139, 0
    %vm161 = vcmask 1040384
    %v163 = vsel %vm161, %v155, 0
    %165 = vmatprep.subr.bf16.mxu0 0
    %166 = vmatpush1.bf16.msra.mxu0 %v154
    %167 = vmatprep.subr.bf16.mxu0 0
    %168 = vmatpush1.bf16.msra.mxu0 %v163
    %169 = vmatprep.subr.bf16.mxu0 0
    %170 = vmatpush1.bf16.msra.mxu0 0
    %171 = vmatprep.subr.bf16.mxu0 0
    %172 = vmatpush1.bf16.msra.mxu0 0
    %173 = vmatprep.subr.bf16.mxu0 0
    %174 = vmatpush1.bf16.msra.mxu0 0
    %175 = vmatprep.subr.bf16.mxu0 0
    %176 = vmatpush1.bf16.msra.mxu0 0
    %177 = vmatprep.subr.bf16.mxu0 0
    %178 = vmatpush1.bf16.msra.mxu0 0
    %179 = vmatprep.subr.bf16.mxu0 0
    %180 = vmatpush1.bf16.msra.mxu0 0
    %181 = vmatprep.subr.bf16.mxu0 0
    %182 = vmatpush1.bf16.msra.mxu0 0
    %183 = vmatprep.subr.bf16.mxu0 0
    %184 = vmatpush1.bf16.msra.mxu0 0
    %185 = vmatprep.subr.bf16.mxu0 0
    %186 = vmatpush1.bf16.msra.mxu0 0
    %187 = vmatprep.subr.bf16.mxu0 0
    %188 = vmatpush1.bf16.msra.mxu0 0
    %189 = vmatprep.subr.bf16.mxu0 0
    %190 = vmatpush1.bf16.msra.mxu0 0
    %191 = vmatprep.subr.bf16.mxu0 0
    %192 = vmatpush1.bf16.msra.mxu0 0
    %193 = vmatprep.subr.bf16.mxu0 0
    %194 = vmatpush1.bf16.msra.mxu0 0
    %195 = vmatprep.subr.bf16.mxu0 0
    %196 = vmatpush1.bf16.msra.mxu0 0
    %197 = vmatprep.mubr.bf16.mxu0 0
    %198 = vmatmul.mubr.bf16.gmra.mrb[0].mxu0 %v159
    %v199 = vpop.f32.mrb[0].mxu0
    %v200 = vadd.f32 %v147, %v199
    %v201 = vpop.f32.mrb[0].mxu0
    %v202 = vpop.f32.mrb[0].mxu0
    %v203 = vpop.f32.mrb[0].mxu0
    %204 = vdwg.mxu0
    %v205 = vmax.f32 %v200, 0.0
    %v206 = vpack.c.bf16 %v205, %v205
    %v207 = vld [vmem:[#allocation8] sm:$0xf]
    %v208 = vld [vmem:[#allocation8 + $0x4] sm:$0xf]
    %v209 = vld [vmem:[#allocation8 + $0x8] sm:$0xf]
    %v210 = vld [vmem:[#allocation8 + $0xc] sm:$0xf]
    %v211 = vld [vmem:[#allocation8 + $0x10] sm:$0xf]
    %v212 = vld [vmem:[#allocation8 + $0x14] sm:$0xf]
    %v213 = vld [vmem:[#allocation8 + $0x18] sm:$0xf]
    %v214 = vld [vmem:[#allocation8 + $0x1c] sm:$0xf]
    %v215 = vld [vmem:[#allocation8 + $0x20] sm:$0xf]
    %v216 = vld [vmem:[#allocation8 + $0x24] sm:$0xf]
    %v217 = vld [vmem:[#allocation8 + $0x28] sm:$0xf]
    %v218 = vld [vmem:[#allocation8 + $0x2c] sm:$0xf]
    %v219 = vld [vmem:[#allocation8 + $0x30] sm:$0xf]
    %v220 = vld [vmem:[#allocation8 + $0x34] sm:$0xf]
    %v221 = vld [vmem:[#allocation8 + $0x38] sm:$0xf]
    %v222 = vld [vmem:[#allocation8 + $0x3c] sm:$0xf]
    %v223 = vld [vmem:[#allocation9 + $0x1] sm:$0x1]
    %v224 = vlaneseq
    %v225 = vshrl.u32 %v224, 7
    %v226 = vsub.s32 0, %v225
    %v227 = vrot.slane %v223, %v226
    %v244 = vunpack.c.l.b16 %v207
    %v245 = vunpack.c.l.b16 %v208
    %v246 = vunpack.c.l.b16 %v209
    %v247 = vunpack.c.l.b16 %v210
    %v248 = vunpack.c.l.b16 %v211
    %v249 = vunpack.c.l.b16 %v212
    %v250 = vunpack.c.l.b16 %v213
    %v251 = vunpack.c.l.b16 %v214
    %v252 = vunpack.c.l.b16 %v215
    %v253 = vunpack.c.l.b16 %v216
    %v254 = vunpack.c.l.b16 %v217
    %v255 = vunpack.c.l.b16 %v218
    %v256 = vunpack.c.l.b16 %v219
    %v257 = vunpack.c.l.b16 %v220
    %v258 = vunpack.c.l.b16 %v221
    %v259 = vunpack.c.l.b16 %v222
    %v260 = vpack.c.b16 %v245, %v244
    %v261 = vpack.c.b16 %v247, %v246
    %v262 = vpack.c.b16 %v249, %v248
    %v263 = vpack.c.b16 %v251, %v250
    %v264 = vpack.c.b16 %v253, %v252
    %v265 = vpack.c.b16 %v255, %v254
    %v266 = vpack.c.b16 %v257, %v256
    %v267 = vpack.c.b16 %v259, %v258
    %276 = vmatprep.subr.bf16.mxu0 0
    %277 = vmatpush1.bf16.msra.mxu0 %v260
    %278 = vmatprep.subr.bf16.mxu0 0
    %279 = vmatpush1.bf16.msra.mxu0 %v261
    %280 = vmatprep.subr.bf16.mxu0 0
    %281 = vmatpush1.bf16.msra.mxu0 %v262
    %282 = vmatprep.subr.bf16.mxu0 0
    %283 = vmatpush1.bf16.msra.mxu0 %v263
    %284 = vmatprep.subr.bf16.mxu0 0
    %285 = vmatpush1.bf16.msra.mxu0 %v264
    %286 = vmatprep.subr.bf16.mxu0 0
    %287 = vmatpush1.bf16.msra.mxu0 %v265
    %288 = vmatprep.subr.bf16.mxu0 0
    %289 = vmatpush1.bf16.msra.mxu0 %v266
    %290 = vmatprep.subr.bf16.mxu0 0
    %291 = vmatpush1.bf16.msra.mxu0 %v267
    %292 = vmatprep.subr.bf16.mxu0 0
    %293 = vmatpush1.bf16.msra.mxu0 0
    %294 = vmatprep.subr.bf16.mxu0 0
    %295 = vmatpush1.bf16.msra.mxu0 0
    %296 = vmatprep.subr.bf16.mxu0 0
    %297 = vmatpush1.bf16.msra.mxu0 0
    %298 = vmatprep.subr.bf16.mxu0 0
    %299 = vmatpush1.bf16.msra.mxu0 0
    %300 = vmatprep.subr.bf16.mxu0 0
    %301 = vmatpush1.bf16.msra.mxu0 0
    %302 = vmatprep.subr.bf16.mxu0 0
    %303 = vmatpush1.bf16.msra.mxu0 0
    %304 = vmatprep.subr.bf16.mxu0 0
    %305 = vmatpush1.bf16.msra.mxu0 0
    %306 = vmatprep.subr.bf16.mxu0 0
    %307 = vmatpush1.bf16.msra.mxu0 0
    %308 = vmatprep.mubr.bf16.mxu0 0
    %309 = vmatmul.mubr.bf16.gmra.mrb[0].mxu0 %v206
    %v310 = vpop.f32.mrb[0].mxu0
    %v311 = vadd.f32 %v227, %v310
    %v312 = vpop.f32.mrb[0].mxu0
    %v313 = vpop.f32.mrb[0].mxu0
    %v314 = vpop.f32.mrb[0].mxu0
    %315 = vdwg.mxu0
    %v316 = vmax.f32 %v311, 0.0
    %v317 = vld [vmem:[%s2] sm:$0xff]
    %v318 = vld [vmem:[%s2 + $0x8] sm:$0xff]
    %v319 = vld [vmem:[%s2 + $0x10] sm:$0xff]
    %v320 = vld [vmem:[%s2 + $0x18] sm:$0xff]
    %v321 = vld [vmem:[%s2 + $0x20] sm:$0xff]
    %v322 = vld [vmem:[%s2 + $0x28] sm:$0xff]
    %v323 = vld [vmem:[%s2 + $0x30] sm:$0xff]
    %v324 = vld [vmem:[%s2 + $0x38] sm:$0xff]
    %v325 = vld [vmem:[%s2 + $0x40] sm:$0xff]
    %v326 = vld [vmem:[%s2 + $0x48] sm:$0xff]
    %v327 = vld [vmem:[%s2 + $0x50] sm:$0xff]
    %v328 = vld [vmem:[%s2 + $0x58] sm:$0xff]
    %v329 = vld [vmem:[%s2 + $0x60] sm:$0xff]
    %v330 = vld [vmem:[%s2 + $0x68] sm:$0xff]
    %v331 = vld [vmem:[%s2 + $0x70] sm:$0xff]
    %v332 = vld [vmem:[%s2 + $0x78] sm:$0xff]
    %v333 = vlaneseq
    %v334 = vshrl.u32 %v333, 7
    %v335 = vadd.s32 %v334, 8
    %v336 = vadd.s32 %v334, 16
    %v337 = vadd.s32 %v334, 24
    %v338 = vadd.s32 %v334, 32
    %v339 = vadd.s32 %v334, 40
    %v340 = vadd.s32 %v334, 48
    %v341 = vadd.s32 %v334, 56
    %v342 = vadd.s32 %v334, 64
    %v343 = vadd.s32 %v334, 72
    %v344 = vadd.s32 %v334, 80
    %v345 = vadd.s32 %v334, 88
    %v346 = vadd.s32 %v334, 96
    %v347 = vadd.s32 %v334, 104
    %v348 = vadd.s32 %v334, 112
    %v349 = vadd.s32 %v334, 120
    %v350 = vand.u32 %v334, 63
    %v351 = vand.u32 %v335, 63
    %v352 = vand.u32 %v336, 63
    %v353 = vand.u32 %v337, 63
    %v354 = vand.u32 %v338, 63
    %v355 = vand.u32 %v339, 63
    %v356 = vand.u32 %v340, 63
    %v357 = vand.u32 %v341, 63
    %v358 = vand.u32 %v342, 63
    %v359 = vand.u32 %v343, 63
    %v360 = vand.u32 %v344, 63
    %v361 = vand.u32 %v345, 63
    %v362 = vand.u32 %v346, 63
    %v363 = vand.u32 %v347, 63
    %v364 = vand.u32 %v348, 63
    %v365 = vand.u32 %v349, 63
    %vm366 = vcmp.eq.s32.totalorder %v350, 0
    %vm367 = vcmp.eq.s32.totalorder %v351, 0
    %vm368 = vcmp.eq.s32.totalorder %v352, 0
    %vm369 = vcmp.eq.s32.totalorder %v353, 0
    %vm370 = vcmp.eq.s32.totalorder %v354, 0
    %vm371 = vcmp.eq.s32.totalorder %v355, 0
    %vm372 = vcmp.eq.s32.totalorder %v356, 0
    %vm373 = vcmp.eq.s32.totalorder %v357, 0
    %vm374 = vcmp.eq.s32.totalorder %v358, 0
    %vm375 = vcmp.eq.s32.totalorder %v359, 0
    %vm376 = vcmp.eq.s32.totalorder %v360, 0
    %vm377 = vcmp.eq.s32.totalorder %v361, 0
    %vm378 = vcmp.eq.s32.totalorder %v362, 0
    %vm379 = vcmp.eq.s32.totalorder %v363, 0
    %vm380 = vcmp.eq.s32.totalorder %v364, 0
    %vm381 = vcmp.eq.s32.totalorder %v365, 0
    %v382 = vrot.slane %v317, 7
    %v383 = vrot.slane %v318, 7
    %v384 = vrot.slane %v319, 7
    %v385 = vrot.slane %v320, 7
    %v386 = vrot.slane %v321, 7
    %v387 = vrot.slane %v322, 7
    %v388 = vrot.slane %v323, 7
    %v389 = vrot.slane %v324, 7
    %v390 = vrot.slane %v325, 7
    %v391 = vrot.slane %v326, 7
    %v392 = vrot.slane %v327, 7
    %v393 = vrot.slane %v328, 7
    %v394 = vrot.slane %v329, 7
    %v395 = vrot.slane %v330, 7
    %v396 = vrot.slane %v331, 7
    %v397 = vrot.slane %v332, 7
    %vm398 = vcmp.lt.s32.totalorder %v334, 1
    %v399 = vsel %vm398, %v396, %v397
    %v400 = vsel %vm398, %v395, %v396
    %v401 = vsel %vm398, %v394, %v395
    %v402 = vsel %vm398, %v393, %v394
    %v403 = vsel %vm398, %v392, %v393
    %v404 = vsel %vm398, %v391, %v392
    %v405 = vsel %vm398, %v390, %v391
    %v406 = vsel %vm398, %v389, %v390
    %v407 = vsel %vm398, %v388, %v389
    %v408 = vsel %vm398, %v387, %v388
    %v409 = vsel %vm398, %v386, %v387
    %v410 = vsel %vm398, %v385, %v386
    %v411 = vsel %vm398, %v384, %v385
    %v412 = vsel %vm398, %v383, %v384
    %v413 = vsel %vm398, %v382, %v383
    %v414 = vsel %vm398, %v397, %v382
    %v415 = vsel %vm366, 1, 0
    %v416 = vsel %vm367, 1, 0
    %v417 = vsel %vm368, 1, 0
    %v418 = vsel %vm369, 1, 0
    %v419 = vsel %vm370, 1, 0
    %v420 = vsel %vm371, 1, 0
    %v421 = vsel %vm372, 1, 0
    %v422 = vsel %vm373, 1, 0
    %v423 = vsel %vm374, 1, 0
    %v424 = vsel %vm375, 1, 0
    %v425 = vsel %vm376, 1, 0
    %v426 = vsel %vm377, 1, 0
    %v427 = vsel %vm378, 1, 0
    %v428 = vsel %vm379, 1, 0
    %v429 = vsel %vm380, 1, 0
    %v430 = vsel %vm381, 1, 0
    %vm431 = vcmp.eq.s32.totalorder %v415, 1
    %vm432 = vcmp.eq.s32.totalorder %v416, 1
    %vm433 = vcmp.eq.s32.totalorder %v417, 1
    %vm434 = vcmp.eq.s32.totalorder %v418, 1
    %vm435 = vcmp.eq.s32.totalorder %v419, 1
    %vm436 = vcmp.eq.s32.totalorder %v420, 1
    %vm437 = vcmp.eq.s32.totalorder %v421, 1
    %vm438 = vcmp.eq.s32.totalorder %v422, 1
    %vm439 = vcmp.eq.s32.totalorder %v423, 1
    %vm440 = vcmp.eq.s32.totalorder %v424, 1
    %vm441 = vcmp.eq.s32.totalorder %v425, 1
    %vm442 = vcmp.eq.s32.totalorder %v426, 1
    %vm443 = vcmp.eq.s32.totalorder %v427, 1
    %vm444 = vcmp.eq.s32.totalorder %v428, 1
    %vm445 = vcmp.eq.s32.totalorder %v429, 1
    %vm446 = vcmp.eq.s32.totalorder %v430, 1
    %v447 = vsel %vm431, 0.0, %v414
    %v448 = vsel %vm432, 0.0, %v413
    %v449 = vsel %vm433, 0.0, %v412
    %v450 = vsel %vm434, 0.0, %v411
    %v451 = vsel %vm435, 0.0, %v410
    %v452 = vsel %vm436, 0.0, %v409
    %v453 = vsel %vm437, 0.0, %v408
    %v454 = vsel %vm438, 0.0, %v407
    %v455 = vsel %vm439, 0.0, %v406
    %v456 = vsel %vm440, 0.0, %v405
    %v457 = vsel %vm441, 0.0, %v404
    %v458 = vsel %vm442, 0.0, %v403
    %v459 = vsel %vm443, 0.0, %v402
    %v460 = vsel %vm444, 0.0, %v401
    %v461 = vsel %vm445, 0.0, %v400
    %v462 = vsel %vm446, 0.0, %v399
    %vm463 = vcmp.eq.s32.totalorder %v350, 63
    %vm464 = vcmp.eq.s32.totalorder %v351, 63
    %vm465 = vcmp.eq.s32.totalorder %v352, 63
    %vm466 = vcmp.eq.s32.totalorder %v353, 63
    %vm467 = vcmp.eq.s32.totalorder %v354, 63
    %vm468 = vcmp.eq.s32.totalorder %v355, 63
    %vm469 = vcmp.eq.s32.totalorder %v356, 63
    %vm470 = vcmp.eq.s32.totalorder %v357, 63
    %vm471 = vcmp.eq.s32.totalorder %v358, 63
    %vm472 = vcmp.eq.s32.totalorder %v359, 63
    %vm473 = vcmp.eq.s32.totalorder %v360, 63
    %vm474 = vcmp.eq.s32.totalorder %v361, 63
    %vm475 = vcmp.eq.s32.totalorder %v362, 63
    %vm476 = vcmp.eq.s32.totalorder %v363, 63
    %vm477 = vcmp.eq.s32.totalorder %v364, 63
    %vm478 = vcmp.eq.s32.totalorder %v365, 63
    %v479 = vrot.slane %v317, 1
    %v480 = vrot.slane %v318, 1
    %v481 = vrot.slane %v319, 1
    %v482 = vrot.slane %v320, 1
    %v483 = vrot.slane %v321, 1
    %v484 = vrot.slane %v322, 1
    %v485 = vrot.slane %v323, 1
    %v486 = vrot.slane %v324, 1
    %v487 = vrot.slane %v325, 1
    %v488 = vrot.slane %v326, 1
    %v489 = vrot.slane %v327, 1
    %v490 = vrot.slane %v328, 1
    %v491 = vrot.slane %v329, 1
    %v492 = vrot.slane %v330, 1
    %v493 = vrot.slane %v331, 1
    %v494 = vrot.slane %v332, 1
    %vm495 = vcmp.lt.s32.totalorder %v334, 7
    %v496 = vsel %vm495, %v493, %v494
    %v497 = vsel %vm495, %v492, %v493
    %v498 = vsel %vm495, %v491, %v492
    %v499 = vsel %vm495, %v490, %v491
    %v500 = vsel %vm495, %v489, %v490
    %v501 = vsel %vm495, %v488, %v489
    %v502 = vsel %vm495, %v487, %v488
    %v503 = vsel %vm495, %v486, %v487
    %v504 = vsel %vm495, %v485, %v486
    %v505 = vsel %vm495, %v484, %v485
    %v506 = vsel %vm495, %v483, %v484
    %v507 = vsel %vm495, %v482, %v483
    %v508 = vsel %vm495, %v481, %v482
    %v509 = vsel %vm495, %v480, %v481
    %v510 = vsel %vm495, %v479, %v480
    %v511 = vsel %vm495, %v494, %v479
    %v512 = vsel %vm463, 1, 0
    %v513 = vsel %vm464, 1, 0
    %v514 = vsel %vm465, 1, 0
    %v515 = vsel %vm466, 1, 0
    %v516 = vsel %vm467, 1, 0
    %v517 = vsel %vm468, 1, 0
    %v518 = vsel %vm469, 1, 0
    %v519 = vsel %vm470, 1, 0
    %v520 = vsel %vm471, 1, 0
    %v521 = vsel %vm472, 1, 0
    %v522 = vsel %vm473, 1, 0
    %v523 = vsel %vm474, 1, 0
    %v524 = vsel %vm475, 1, 0
    %v525 = vsel %vm476, 1, 0
    %v526 = vsel %vm477, 1, 0
    %v527 = vsel %vm478, 1, 0
    %vm528 = vcmp.eq.s32.totalorder %v512, 1
    %vm529 = vcmp.eq.s32.totalorder %v513, 1
    %vm530 = vcmp.eq.s32.totalorder %v514, 1
    %vm531 = vcmp.eq.s32.totalorder %v515, 1
    %vm532 = vcmp.eq.s32.totalorder %v516, 1
    %vm533 = vcmp.eq.s32.totalorder %v517, 1
    %vm534 = vcmp.eq.s32.totalorder %v518, 1
    %vm535 = vcmp.eq.s32.totalorder %v519, 1
    %vm536 = vcmp.eq.s32.totalorder %v520, 1
    %vm537 = vcmp.eq.s32.totalorder %v521, 1
    %vm538 = vcmp.eq.s32.totalorder %v522, 1
    %vm539 = vcmp.eq.s32.totalorder %v523, 1
    %vm540 = vcmp.eq.s32.totalorder %v524, 1
    %vm541 = vcmp.eq.s32.totalorder %v525, 1
    %vm542 = vcmp.eq.s32.totalorder %v526, 1
    %vm543 = vcmp.eq.s32.totalorder %v527, 1
    %v544 = vsel %vm528, 0.0, %v510
    %v545 = vsel %vm529, 0.0, %v509
    %v546 = vsel %vm530, 0.0, %v508
    %v547 = vsel %vm531, 0.0, %v507
    %v548 = vsel %vm532, 0.0, %v506
    %v549 = vsel %vm533, 0.0, %v505
    %v550 = vsel %vm534, 0.0, %v504
    %v551 = vsel %vm535, 0.0, %v503
    %v552 = vsel %vm536, 0.0, %v502
    %v553 = vsel %vm537, 0.0, %v501
    %v554 = vsel %vm538, 0.0, %v500
    %v555 = vsel %vm539, 0.0, %v499
    %v556 = vsel %vm540, 0.0, %v498
    %v557 = vsel %vm541, 0.0, %v497
    %v558 = vsel %vm542, 0.0, %v496
    %v559 = vsel %vm543, 0.0, %v511
    %v560 = vld [vmem:[#allocation11] sm:$0x1]
    %v561 = vlaneseq
    %v562 = vshrl.u32 %v561, 7
    %v563 = vsub.s32 0, %v562
    %v564 = vrot.slane %v560, %v563
    %v565 = vmul.f32 %v447, %v564
    %v566 = vmul.f32 %v448, %v564
    %v567 = vmul.f32 %v449, %v564
    %v568 = vmul.f32 %v450, %v564
    %v569 = vmul.f32 %v451, %v564
    %v570 = vmul.f32 %v452, %v564
    %v571 = vmul.f32 %v453, %v564
    %v572 = vmul.f32 %v454, %v564
    %v573 = vmul.f32 %v455, %v564
    %v574 = vmul.f32 %v456, %v564
    %v575 = vmul.f32 %v457, %v564
    %v576 = vmul.f32 %v458, %v564
    %v577 = vmul.f32 %v459, %v564
    %v578 = vmul.f32 %v460, %v564
    %v579 = vmul.f32 %v461, %v564
    %v580 = vmul.f32 %v462, %v564
    %v581 = vld [vmem:[#allocation11 + $0x1] sm:$0x1]
    %v582 = vlaneseq
    %v583 = vshrl.u32 %v582, 7
    %v584 = vsub.s32 0, %v583
    %v585 = vrot.slane %v581, %v584
    %v586 = vmul.f32 %v317, %v585
    %v587 = vmul.f32 %v318, %v585
    %v588 = vmul.f32 %v319, %v585
    %v589 = vmul.f32 %v320, %v585
    %v590 = vmul.f32 %v321, %v585
    %v591 = vmul.f32 %v322, %v585
    %v592 = vmul.f32 %v323, %v585
    %v593 = vmul.f32 %v324, %v585
    %v594 = vmul.f32 %v325, %v585
    %v595 = vmul.f32 %v326, %v585
    %v596 = vmul.f32 %v327, %v585
    %v597 = vmul.f32 %v328, %v585
    %v598 = vmul.f32 %v329, %v585
    %v599 = vmul.f32 %v330, %v585
    %v600 = vmul.f32 %v331, %v585
    %v601 = vmul.f32 %v332, %v585
    %v602 = vadd.f32 %v565, %v586
    %v603 = vadd.f32 %v566, %v587
    %v604 = vadd.f32 %v567, %v588
    %v605 = vadd.f32 %v568, %v589
    %v606 = vadd.f32 %v569, %v590
    %v607 = vadd.f32 %v570, %v591
    %v608 = vadd.f32 %v571, %v592
    %v609 = vadd.f32 %v572, %v593
    %v610 = vadd.f32 %v573, %v594
    %v611 = vadd.f32 %v574, %v595
    %v612 = vadd.f32 %v575, %v596
    %v613 = vadd.f32 %v576, %v597
    %v614 = vadd.f32 %v577, %v598
    %v615 = vadd.f32 %v578, %v599
    %v616 = vadd.f32 %v579, %v600
    %v617 = vadd.f32 %v580, %v601
    %v618 = vld [vmem:[#allocation11 + $0x2] sm:$0x1]
    %v619 = vlaneseq
    %v620 = vshrl.u32 %v619, 7
    %v621 = vsub.s32 0, %v620
    %v622 = vrot.slane %v618, %v621
    %v623 = vmul.f32 %v544, %v622
    %v624 = vmul.f32 %v545, %v622
    %v625 = vmul.f32 %v546, %v622
    %v626 = vmul.f32 %v547, %v622
    %v627 = vmul.f32 %v548, %v622
    %v628 = vmul.f32 %v549, %v622
    %v629 = vmul.f32 %v550, %v622
    %v630 = vmul.f32 %v551, %v622
    %v631 = vmul.f32 %v552, %v622
    %v632 = vmul.f32 %v553, %v622
    %v633 = vmul.f32 %v554, %v622
    %v634 = vmul.f32 %v555, %v622
    %v635 = vmul.f32 %v556, %v622
    %v636 = vmul.f32 %v557, %v622
    %v637 = vmul.f32 %v558, %v622
    %v638 = vmul.f32 %v559, %v622
    %v639 = vadd.f32 %v602, %v623
    %v640 = vadd.f32 %v603, %v624
    %v641 = vadd.f32 %v604, %v625
    %v642 = vadd.f32 %v605, %v626
    %v643 = vadd.f32 %v606, %v627
    %v644 = vadd.f32 %v607, %v628
    %v645 = vadd.f32 %v608, %v629
    %v646 = vadd.f32 %v609, %v630
    %v647 = vadd.f32 %v610, %v631
    %v648 = vadd.f32 %v611, %v632
    %v649 = vadd.f32 %v612, %v633
    %v650 = vadd.f32 %v613, %v634
    %v651 = vadd.f32 %v614, %v635
    %v652 = vadd.f32 %v615, %v636
    %v653 = vadd.f32 %v616, %v637
    %v654 = vadd.f32 %v617, %v638
    %v655 = vld [vmem:[#allocation11 + $0x3] sm:$0x1]
    %v656 = vlaneseq
    %v657 = vshrl.u32 %v656, 7
    %v658 = vsub.s32 0, %v657
    %v659 = vrot.slane %v655, %v658
    %v660 = vadd.f32 %v639, %v659
    %v661 = vadd.f32 %v640, %v659
    %v662 = vadd.f32 %v641, %v659
    %v663 = vadd.f32 %v642, %v659
    %v664 = vadd.f32 %v643, %v659
    %v665 = vadd.f32 %v644, %v659
    %v666 = vadd.f32 %v645, %v659
    %v667 = vadd.f32 %v646, %v659
    %v668 = vadd.f32 %v647, %v659
    %v669 = vadd.f32 %v648, %v659
    %v670 = vadd.f32 %v649, %v659
    %v671 = vadd.f32 %v650, %v659
    %v672 = vadd.f32 %v651, %v659
    %v673 = vadd.f32 %v652, %v659
    %v674 = vadd.f32 %v653, %v659
    %v675 = vadd.f32 %v654, %v659
    %v676 = vpack.c.bf16 %v661, %v660
    %v677 = vpack.c.bf16 %v663, %v662
    %v678 = vpack.c.bf16 %v665, %v664
    %v679 = vpack.c.bf16 %v667, %v666
    %v680 = vpack.c.bf16 %v669, %v668
    %v681 = vpack.c.bf16 %v671, %v670
    %v682 = vpack.c.bf16 %v673, %v672
    %v683 = vpack.c.bf16 %v675, %v674
    %v684 = vld [vmem:[%s8] sm:$0xf]
    %v685 = vld [vmem:[%s8 + $0x4] sm:$0x1]
    %v686 = vld [vmem:[#allocation12] sm:$0x1]
    %v688 = vlaneseq
    %v689 = vshrl.u32 %v688, 7
    %v690 = vsub.s32 0, %v689
    %v691 = vrot.slane %v686, %v690
    %v695 = vunpack.c.l.b16 %v684
    %v696 = vunpack.c.l.b16 %v685
    %v697 = vpack.c.b16 %v696, %v695
    %v699 = vsel %vm126, %v676, 0
    %v702 = vsel %vm126, %v677, 0
    %v705 = vsel %vm126, %v678, 0
    %v708 = vsel %vm126, %v679, 0
    %v711 = vsel %vm126, %v680, 0
    %v714 = vsel %vm126, %v681, 0
    %v717 = vsel %vm126, %v682, 0
    %v720 = vsel %vm126, %v683, 0
    %vm722 = vcmask 1043456
    %vm723 = vcmask 1044480
    %v724 = vsel %vm722, 4294967295, 65535
    %v725 = vsel %vm723, %v724, 0
    %v727 = vand.u32 %v697, %v725
    %729 = vmatprep.subr.bf16.mxu0 0
    %730 = vmatpush1.bf16.msra.mxu0 %v727
    %731 = vmatprep.subr.bf16.mxu0 0
    %732 = vmatpush1.bf16.msra.mxu0 0
    %733 = vmatprep.subr.bf16.mxu0 0
    %734 = vmatpush1.bf16.msra.mxu0 0
    %735 = vmatprep.subr.bf16.mxu0 0
    %736 = vmatpush1.bf16.msra.mxu0 0
    %737 = vmatprep.subr.bf16.mxu0 0
    %738 = vmatpush1.bf16.msra.mxu0 0
    %739 = vmatprep.subr.bf16.mxu0 0
    %740 = vmatpush1.bf16.msra.mxu0 0
    %741 = vmatprep.subr.bf16.mxu0 0
    %742 = vmatpush1.bf16.msra.mxu0 0
    %743 = vmatprep.subr.bf16.mxu0 0
    %744 = vmatpush1.bf16.msra.mxu0 0
    %745 = vmatprep.subr.bf16.mxu0 0
    %746 = vmatpush1.bf16.msra.mxu0 0
    %747 = vmatprep.subr.bf16.mxu0 0
    %748 = vmatpush1.bf16.msra.mxu0 0
    %749 = vmatprep.subr.bf16.mxu0 0
    %750 = vmatpush1.bf16.msra.mxu0 0
    %751 = vmatprep.subr.bf16.mxu0 0
    %752 = vmatpush1.bf16.msra.mxu0 0
    %753 = vmatprep.subr.bf16.mxu0 0
    %754 = vmatpush1.bf16.msra.mxu0 0
    %755 = vmatprep.subr.bf16.mxu0 0
    %756 = vmatpush1.bf16.msra.mxu0 0
    %757 = vmatprep.subr.bf16.mxu0 0
    %758 = vmatpush1.bf16.msra.mxu0 0
    %759 = vmatprep.subr.bf16.mxu0 0
    %760 = vmatpush1.bf16.msra.mxu0 0
    %761 = vmatprep.mubr.bf16.mxu0 0
    %762 = vmatmul.mubr.bf16.gmra.mrb[0].mxu0 %v699
    %v763 = vpop.f32.mrb[0].mxu0
    %v764 = vadd.f32 %v691, %v763
    %v765 = vpop.f32.mrb[0].mxu0
    %v766 = vpop.f32.mrb[0].mxu0
    %v767 = vadd.f32 %v691, %v766
    %v768 = vpop.f32.mrb[0].mxu0
    %769 = vmatprep.mubr.bf16.mxu0 0
    %770 = vmatmul.mubr.bf16.gmra.mrb[0].mxu0 %v702
    %v771 = vpop.f32.mrb[0].mxu0
    %v772 = vadd.f32 %v691, %v771
    %v773 = vpop.f32.mrb[0].mxu0
    %v774 = vpop.f32.mrb[0].mxu0
    %v775 = vadd.f32 %v691, %v774
    %v776 = vpop.f32.mrb[0].mxu0
    %777 = vmatprep.mubr.bf16.mxu0 0
    %778 = vmatmul.mubr.bf16.gmra.mrb[0].mxu0 %v705
    %v779 = vpop.f32.mrb[0].mxu0
    %v780 = vadd.f32 %v691, %v779
    %v781 = vpop.f32.mrb[0].mxu0
    %v782 = vpop.f32.mrb[0].mxu0
    %v783 = vadd.f32 %v691, %v782
    %v784 = vpop.f32.mrb[0].mxu0
    %785 = vmatprep.mubr.bf16.mxu0 0
    %786 = vmatmul.mubr.bf16.gmra.mrb[0].mxu0 %v708
    %v787 = vpop.f32.mrb[0].mxu0
    %v788 = vadd.f32 %v691, %v787
    %v789 = vpop.f32.mrb[0].mxu0
    %v790 = vpop.f32.mrb[0].mxu0
    %v791 = vadd.f32 %v691, %v790
    %v792 = vpop.f32.mrb[0].mxu0
    %793 = vmatprep.mubr.bf16.mxu0 0
    %794 = vmatmul.mubr.bf16.gmra.mrb[0].mxu0 %v711
    %v795 = vpop.f32.mrb[0].mxu0
    %v796 = vadd.f32 %v691, %v795
    %v797 = vpop.f32.mrb[0].mxu0
    %v798 = vpop.f32.mrb[0].mxu0
    %v799 = vadd.f32 %v691, %v798
    %v800 = vpop.f32.mrb[0].mxu0
    %801 = vmatprep.mubr.bf16.mxu0 0
    %802 = vmatmul.mubr.bf16.gmra.mrb[0].mxu0 %v714
    %v803 = vpop.f32.mrb[0].mxu0
    %v804 = vadd.f32 %v691, %v803
    %v805 = vpop.f32.mrb[0].mxu0
    %v806 = vpop.f32.mrb[0].mxu0
    %v807 = vadd.f32 %v691, %v806
    %v808 = vpop.f32.mrb[0].mxu0
    %809 = vmatprep.mubr.bf16.mxu0 0
    %810 = vmatmul.mubr.bf16.gmra.mrb[0].mxu0 %v717
    %v811 = vpop.f32.mrb[0].mxu0
    %v812 = vadd.f32 %v691, %v811
    %v813 = vpop.f32.mrb[0].mxu0
    %v814 = vpop.f32.mrb[0].mxu0
    %v815 = vadd.f32 %v691, %v814
    %v816 = vpop.f32.mrb[0].mxu0
    %817 = vmatprep.mubr.bf16.mxu0 0
    %818 = vmatmul.mubr.bf16.gmra.mrb[0].mxu0 %v720
    %v819 = vpop.f32.mrb[0].mxu0
    %v820 = vadd.f32 %v691, %v819
    %v821 = vpop.f32.mrb[0].mxu0
    %v822 = vpop.f32.mrb[0].mxu0
    %v823 = vadd.f32 %v691, %v822
    %v824 = vpop.f32.mrb[0].mxu0
    %825 = vdwg.mxu0
    %v826 = vmax.f32 %v764, 0.0
    %v827 = vmax.f32 %v767, 0.0
    %v828 = vmax.f32 %v772, 0.0
    %v829 = vmax.f32 %v775, 0.0
    %v830 = vmax.f32 %v780, 0.0
    %v831 = vmax.f32 %v783, 0.0
    %v832 = vmax.f32 %v788, 0.0
    %v833 = vmax.f32 %v791, 0.0
    %v834 = vmax.f32 %v796, 0.0
    %v835 = vmax.f32 %v799, 0.0
    %v836 = vmax.f32 %v804, 0.0
    %v837 = vmax.f32 %v807, 0.0
    %v838 = vmax.f32 %v812, 0.0
    %v839 = vmax.f32 %v815, 0.0
    %v840 = vmax.f32 %v820, 0.0
    %v841 = vmax.f32 %v823, 0.0
    %v842 = vrot.slane %v826, 1
    %v843 = vrot.slane %v827, 1
    %v844 = vrot.slane %v828, 1
    %v845 = vrot.slane %v829, 1
    %v846 = vrot.slane %v830, 1
    %v847 = vrot.slane %v831, 1
    %v848 = vrot.slane %v832, 1
    %v849 = vrot.slane %v833, 1
    %v850 = vrot.slane %v834, 1
    %v851 = vrot.slane %v835, 1
    %v852 = vrot.slane %v836, 1
    %v853 = vrot.slane %v837, 1
    %v854 = vrot.slane %v838, 1
    %v855 = vrot.slane %v839, 1
    %v856 = vrot.slane %v840, 1
    %v857 = vrot.slane %v841, 1
    %v858 = vsel %vm495, %v856, %v857
    %v859 = vsel %vm495, %v855, %v856
    %v860 = vsel %vm495, %v854, %v855
    %v861 = vsel %vm495, %v853, %v854
    %v862 = vsel %vm495, %v852, %v853
    %v863 = vsel %vm495, %v851, %v852
    %v864 = vsel %vm495, %v850, %v851
    %v865 = vsel %vm495, %v849, %v850
    %v866 = vsel %vm495, %v848, %v849
    %v867 = vsel %vm495, %v847, %v848
    %v868 = vsel %vm495, %v846, %v847
    %v869 = vsel %vm495, %v845, %v846
    %v870 = vsel %vm495, %v844, %v845
    %v871 = vsel %vm495, %v843, %v844
    %v872 = vsel %vm495, %v842, %v843
    %v873 = vsel %vm495, %v857, %v842
    %v874 = vmax.f32 %v826, %v872
    %v875 = vmax.f32 %v827, %v871
    %v876 = vmax.f32 %v828, %v870
    %v877 = vmax.f32 %v829, %v869
    %v878 = vmax.f32 %v830, %v868
    %v879 = vmax.f32 %v831, %v867
    %v880 = vmax.f32 %v832, %v866
    %v881 = vmax.f32 %v833, %v865
    %v882 = vmax.f32 %v834, %v864
    %v883 = vmax.f32 %v835, %v863
    %v884 = vmax.f32 %v836, %v862
    %v885 = vmax.f32 %v837, %v861
    %v886 = vmax.f32 %v838, %v860
    %v887 = vmax.f32 %v839, %v859
    %v888 = vmax.f32 %v840, %v858
    %v889 = vmax.f32 %v841, %v873
    %vm890 = vcmask 523264
    %891 = vst.msk [vmem:[#allocation2] sm:$0xff] %vm890, %v874
    %892 = vst.msk [vmem:[#allocation2 + $0x8] sm:$0xff] %vm890, %v875
    %893 = vst.msk [vmem:[#allocation2 + $0x10] sm:$0xff] %vm890, %v876
    %894 = vst.msk [vmem:[#allocation2 + $0x18] sm:$0xff] %vm890, %v877
    %895 = vst.msk [vmem:[#allocation2 + $0x20] sm:$0xff] %vm890, %v878
    %896 = vst.msk [vmem:[#allocation2 + $0x28] sm:$0xff] %vm890, %v879
    %897 = vst.msk [vmem:[#allocation2 + $0x30] sm:$0xff] %vm890, %v880
    %898 = vst.msk [vmem:[#allocation2 + $0x38] sm:$0xff] %vm890, %v881
    %899 = vst.msk [vmem:[#allocation2 + $0x40] sm:$0xff] %vm890, %v882
    %900 = vst.msk [vmem:[#allocation2 + $0x48] sm:$0xff] %vm890, %v883
    %901 = vst.msk [vmem:[#allocation2 + $0x50] sm:$0xff] %vm890, %v884
    %902 = vst.msk [vmem:[#allocation2 + $0x58] sm:$0xff] %vm890, %v885
    %903 = vst.msk [vmem:[#allocation2 + $0x60] sm:$0xff] %vm890, %v886
    %904 = vst.msk [vmem:[#allocation2 + $0x68] sm:$0xff] %vm890, %v887
    %905 = vst.msk [vmem:[#allocation2 + $0x70] sm:$0xff] %vm890, %v888
    %906 = vst.msk [vmem:[#allocation2 + $0x78] sm:$0xff] %vm890, %v889
    %v907 = vld [vmem:[#allocation2] ss:$2 sm:$0xff]
    %s908 = scalar_lea.vmem [#allocation2], 16
    %v909 = vld [vmem:[%s908] ss:$2 sm:$0xff]
    %s910 = scalar_lea.vmem [#allocation2], 32
    %v911 = vld [vmem:[%s910] ss:$2 sm:$0xff]
    %s912 = scalar_lea.vmem [#allocation2], 48
    %v913 = vld [vmem:[%s912] ss:$2 sm:$0xff]
    %s914 = scalar_lea.vmem [#allocation2], 64
    %v915 = vld [vmem:[%s914] ss:$2 sm:$0xff]
    %s916 = scalar_lea.vmem [#allocation2], 80
    %v917 = vld [vmem:[%s916] ss:$2 sm:$0xff]
    %s918 = scalar_lea.vmem [#allocation2], 96
    %v919 = vld [vmem:[%s918] ss:$2 sm:$0xff]
    %s920 = scalar_lea.vmem [#allocation2], 112
    %v921 = vld [vmem:[%s920] ss:$2 sm:$0xff]
    %v922 = vand.u32 %v334, 31
    %v923 = vand.u32 %v335, 31
    %v924 = vand.u32 %v336, 31
    %v925 = vand.u32 %v337, 31
    %v926 = vand.u32 %v338, 31
    %v927 = vand.u32 %v339, 31
    %v928 = vand.u32 %v340, 31
    %v929 = vand.u32 %v341, 31
    %vm930 = vcmp.eq.s32.totalorder %v922, 0
    %vm931 = vcmp.eq.s32.totalorder %v923, 0
    %vm932 = vcmp.eq.s32.totalorder %v924, 0
    %vm933 = vcmp.eq.s32.totalorder %v925, 0
    %vm934 = vcmp.eq.s32.totalorder %v926, 0
    %vm935 = vcmp.eq.s32.totalorder %v927, 0
    %vm936 = vcmp.eq.s32.totalorder %v928, 0
    %vm937 = vcmp.eq.s32.totalorder %v929, 0
    %v938 = vrot.slane %v907, 7
    %v939 = vrot.slane %v909, 7
    %v940 = vrot.slane %v911, 7
    %v941 = vrot.slane %v913, 7
    %v942 = vrot.slane %v915, 7
    %v943 = vrot.slane %v917, 7
    %v944 = vrot.slane %v919, 7
    %v945 = vrot.slane %v921, 7
    %v946 = vsel %vm398, %v944, %v945
    %v947 = vsel %vm398, %v943, %v944
    %v948 = vsel %vm398, %v942, %v943
    %v949 = vsel %vm398, %v941, %v942
    %v950 = vsel %vm398, %v940, %v941
    %v951 = vsel %vm398, %v939, %v940
    %v952 = vsel %vm398, %v938, %v939
    %v953 = vsel %vm398, %v945, %v938
    %v954 = vsel %vm930, 1, 0
    %v955 = vsel %vm931, 1, 0
    %v956 = vsel %vm932, 1, 0
    %v957 = vsel %vm933, 1, 0
    %v958 = vsel %vm934, 1, 0
    %v959 = vsel %vm935, 1, 0
    %v960 = vsel %vm936, 1, 0
    %v961 = vsel %vm937, 1, 0
    %vm962 = vcmp.eq.s32.totalorder %v954, 1
    %vm963 = vcmp.eq.s32.totalorder %v955, 1
    %vm964 = vcmp.eq.s32.totalorder %v956, 1
    %vm965 = vcmp.eq.s32.totalorder %v957, 1
    %vm966 = vcmp.eq.s32.totalorder %v958, 1
    %vm967 = vcmp.eq.s32.totalorder %v959, 1
    %vm968 = vcmp.eq.s32.totalorder %v960, 1
    %vm969 = vcmp.eq.s32.totalorder %v961, 1
    %v970 = vsel %vm962, 0.0, %v953
    %v971 = vsel %vm963, 0.0, %v952
    %v972 = vsel %vm964, 0.0, %v951
    %v973 = vsel %vm965, 0.0, %v950
    %v974 = vsel %vm966, 0.0, %v949
    %v975 = vsel %vm967, 0.0, %v948
    %v976 = vsel %vm968, 0.0, %v947
    %v977 = vsel %vm969, 0.0, %v946
    %vm978 = vcmp.eq.s32.totalorder %v922, 31
    %vm979 = vcmp.eq.s32.totalorder %v923, 31
    %vm980 = vcmp.eq.s32.totalorder %v924, 31
    %vm981 = vcmp.eq.s32.totalorder %v925, 31
    %vm982 = vcmp.eq.s32.totalorder %v926, 31
    %vm983 = vcmp.eq.s32.totalorder %v927, 31
    %vm984 = vcmp.eq.s32.totalorder %v928, 31
    %vm985 = vcmp.eq.s32.totalorder %v929, 31
    %v986 = vrot.slane %v907, 1
    %v987 = vrot.slane %v909, 1
    %v988 = vrot.slane %v911, 1
    %v989 = vrot.slane %v913, 1
    %v990 = vrot.slane %v915, 1
    %v991 = vrot.slane %v917, 1
    %v992 = vrot.slane %v919, 1
    %v993 = vrot.slane %v921, 1
    %v994 = vsel %vm495, %v992, %v993
    %v995 = vsel %vm495, %v991, %v992
    %v996 = vsel %vm495, %v990, %v991
    %v997 = vsel %vm495, %v989, %v990
    %v998 = vsel %vm495, %v988, %v989
    %v999 = vsel %vm495, %v987, %v988
    %v1000 = vsel %vm495, %v986, %v987
    %v1001 = vsel %vm495, %v993, %v986
    %v1002 = vsel %vm978, 1, 0
    %v1003 = vsel %vm979, 1, 0
    %v1004 = vsel %vm980, 1, 0
    %v1005 = vsel %vm981, 1, 0
    %v1006 = vsel %vm982, 1, 0
    %v1007 = vsel %vm983, 1, 0
    %v1008 = vsel %vm984, 1, 0
    %v1009 = vsel %vm985, 1, 0
    %vm1010 = vcmp.eq.s32.totalorder %v1002, 1
    %vm1011 = vcmp.eq.s32.totalorder %v1003, 1
    %vm1012 = vcmp.eq.s32.totalorder %v1004, 1
    %vm1013 = vcmp.eq.s32.totalorder %v1005, 1
    %vm1014 = vcmp.eq.s32.totalorder %v1006, 1
    %vm1015 = vcmp.eq.s32.totalorder %v1007, 1
    %vm1016 = vcmp.eq.s32.totalorder %v1008, 1
    %vm1017 = vcmp.eq.s32.totalorder %v1009, 1
    %v1018 = vsel %vm1010, 0.0, %v1000
    %v1019 = vsel %vm1011, 0.0, %v999
    %v1020 = vsel %vm1012, 0.0, %v998
    %v1021 = vsel %vm1013, 0.0, %v997
    %v1022 = vsel %vm1014, 0.0, %v996
    %v1023 = vsel %vm1015, 0.0, %v995
    %v1024 = vsel %vm1016, 0.0, %v994
    %v1025 = vsel %vm1017, 0.0, %v1001
    %v1026 = vld [vmem:[#allocation11 + $0x4] sm:$0x1]
    %v1027 = vlaneseq
    %v1028 = vshrl.u32 %v1027, 7
    %v1029 = vsub.s32 0, %v1028
    %v1030 = vrot.slane %v1026, %v1029
    %v1031 = vmul.f32 %v970, %v1030
    %v1032 = vmul.f32 %v971, %v1030
    %v1033 = vmul.f32 %v972, %v1030
    %v1034 = vmul.f32 %v973, %v1030
    %v1035 = vmul.f32 %v974, %v1030
    %v1036 = vmul.f32 %v975, %v1030
    %v1037 = vmul.f32 %v976, %v1030
    %v1038 = vmul.f32 %v977, %v1030
    %v1039 = vld [vmem:[#allocation11 + $0x5] sm:$0x1]
    %v1040 = vlaneseq
    %v1041 = vshrl.u32 %v1040, 7
    %v1042 = vsub.s32 0, %v1041
    %v1043 = vrot.slane %v1039, %v1042
    %v1044 = vmul.f32 %v907, %v1043
    %v1045 = vmul.f32 %v909, %v1043
    %v1046 = vmul.f32 %v911, %v1043
    %v1047 = vmul.f32 %v913, %v1043
    %v1048 = vmul.f32 %v915, %v1043
    %v1049 = vmul.f32 %v917, %v1043
    %v1050 = vmul.f32 %v919, %v1043
    %v1051 = vmul.f32 %v921, %v1043
    %v1052 = vadd.f32 %v1031, %v1044
    %v1053 = vadd.f32 %v1032, %v1045
    %v1054 = vadd.f32 %v1033, %v1046
    %v1055 = vadd.f32 %v1034, %v1047
    %v1056 = vadd.f32 %v1035, %v1048
    %v1057 = vadd.f32 %v1036, %v1049
    %v1058 = vadd.f32 %v1037, %v1050
    %v1059 = vadd.f32 %v1038, %v1051
    %v1060 = vld [vmem:[#allocation11 + $0x6] sm:$0x1]
    %v1061 = vlaneseq
    %v1062 = vshrl.u32 %v1061, 7
    %v1063 = vsub.s32 0, %v1062
    %v1064 = vrot.slane %v1060, %v1063
    %v1065 = vmul.f32 %v1018, %v1064
    %v1066 = vmul.f32 %v1019, %v1064
    %v1067 = vmul.f32 %v1020, %v1064
    %v1068 = vmul.f32 %v1021, %v1064
    %v1069 = vmul.f32 %v1022, %v1064
    %v1070 = vmul.f32 %v1023, %v1064
    %v1071 = vmul.f32 %v1024, %v1064
    %v1072 = vmul.f32 %v1025, %v1064
    %v1073 = vadd.f32 %v1052, %v1065
    %v1074 = vadd.f32 %v1053, %v1066
    %v1075 = vadd.f32 %v1054, %v1067
    %v1076 = vadd.f32 %v1055, %v1068
    %v1077 = vadd.f32 %v1056, %v1069
    %v1078 = vadd.f32 %v1057, %v1070
    %v1079 = vadd.f32 %v1058, %v1071
    %v1080 = vadd.f32 %v1059, %v1072
    %v1081 = vld [vmem:[#allocation11 + $0x7] sm:$0x1]
    %v1082 = vlaneseq
    %v1083 = vshrl.u32 %v1082, 7
    %v1084 = vsub.s32 0, %v1083
    %v1085 = vrot.slane %v1081, %v1084
    %v1086 = vadd.f32 %v1073, %v1085
    %v1087 = vadd.f32 %v1074, %v1085
    %v1088 = vadd.f32 %v1075, %v1085
    %v1089 = vadd.f32 %v1076, %v1085
    %v1090 = vadd.f32 %v1077, %v1085
    %v1091 = vadd.f32 %v1078, %v1085
    %v1092 = vadd.f32 %v1079, %v1085
    %v1093 = vadd.f32 %v1080, %v1085
    %v1094 = vpack.c.bf16 %v1087, %v1086
    %v1095 = vpack.c.bf16 %v1089, %v1088
    %v1096 = vpack.c.bf16 %v1091, %v1090
    %v1097 = vpack.c.bf16 %v1093, %v1092
    %v1098 = vld [vmem:[#allocation14] sm:$0xf]
    %v1099 = vld [vmem:[#allocation14 + $0x4] sm:$0xf]
    %v1100 = vld [vmem:[#allocation14 + $0x8] sm:$0xf]
    %v1101 = vld [vmem:[#allocation14 + $0xc] sm:$0xf]
    %v1102 = vld [vmem:[#allocation14 + $0x10] sm:$0xf]
    %v1103 = vld [vmem:[#allocation14 + $0x14] sm:$0xf]
    %v1104 = vld [vmem:[#allocation14 + $0x18] sm:$0xf]
    %v1105 = vld [vmem:[#allocation14 + $0x1c] sm:$0xf]
    %v1106 = vld [vmem:[#allocation12 + $0x1] sm:$0x1]
    %v1108 = vlaneseq
    %v1109 = vshrl.u32 %v1108, 7
    %v1110 = vsub.s32 0, %v1109
    %v1111 = vrot.slane %v1106, %v1110
    %v1121 = vunpack.c.l.b16 %v1098
    %v1122 = vunpack.c.l.b16 %v1099
    %v1123 = vunpack.c.l.b16 %v1100
    %v1124 = vunpack.c.l.b16 %v1101
    %v1125 = vunpack.c.l.b16 %v1102
    %v1126 = vunpack.c.l.b16 %v1103
    %v1127 = vunpack.c.l.b16 %v1104
    %v1128 = vunpack.c.l.b16 %v1105
    %v1129 = vpack.c.b16 %v1122, %v1121
    %v1130 = vpack.c.b16 %v1124, %v1123
    %v1131 = vpack.c.b16 %v1126, %v1125
    %v1132 = vpack.c.b16 %v1128, %v1127
    %v1138 = vsel %vm890, %v1094, 0
    %v1141 = vsel %vm890, %v1095, 0
    %v1144 = vsel %vm890, %v1096, 0
    %v1147 = vsel %vm890, %v1097, 0
    %1149 = vmatprep.subr.bf16.mxu0 0
    %1150 = vmatpush1.bf16.msra.mxu0 %v1129
    %1151 = vmatprep.subr.bf16.mxu0 0
    %1152 = vmatpush1.bf16.msra.mxu0 %v1130
    %1153 = vmatprep.subr.bf16.mxu0 0
    %1154 = vmatpush1.bf16.msra.mxu0 %v1131
    %1155 = vmatprep.subr.bf16.mxu0 0
    %1156 = vmatpush1.bf16.msra.mxu0 %v1132
    %1157 = vmatprep.subr.bf16.mxu0 0
    %1158 = vmatpush1.bf16.msra.mxu0 0
    %1159 = vmatprep.subr.bf16.mxu0 0
    %1160 = vmatpush1.bf16.msra.mxu0 0
    %1161 = vmatprep.subr.bf16.mxu0 0
    %1162 = vmatpush1.bf16.msra.mxu0 0
    %1163 = vmatprep.subr.bf16.mxu0 0
    %1164 = vmatpush1.bf16.msra.mxu0 0
    %1165 = vmatprep.subr.bf16.mxu0 0
    %1166 = vmatpush1.bf16.msra.mxu0 0
    %1167 = vmatprep.subr.bf16.mxu0 0
    %1168 = vmatpush1.bf16.msra.mxu0 0
    %1169 = vmatprep.subr.bf16.mxu0 0
    %1170 = vmatpush1.bf16.msra.mxu0 0
    %1171 = vmatprep.subr.bf16.mxu0 0
    %1172 = vmatpush1.bf16.msra.mxu0 0
    %1173 = vmatprep.subr.bf16.mxu0 0
    %1174 = vmatpush1.bf16.msra.mxu0 0
    %1175 = vmatprep.subr.bf16.mxu0 0
    %1176 = vmatpush1.bf16.msra.mxu0 0
    %1177 = vmatprep.subr.bf16.mxu0 0
    %1178 = vmatpush1.bf16.msra.mxu0 0
    %1179 = vmatprep.subr.bf16.mxu0 0
    %1180 = vmatpush1.bf16.msra.mxu0 0
    %1181 = vmatprep.mubr.bf16.mxu0 0
    %1182 = vmatmul.mubr.bf16.gmra.mrb[0].mxu0 %v1138
    %v1183 = vpop.f32.mrb[0].mxu0
    %v1184 = vadd.f32 %v1111, %v1183
    %v1185 = vpop.f32.mrb[0].mxu0
    %v1186 = vpop.f32.mrb[0].mxu0
    %v1187 = vadd.f32 %v1111, %v1186
    %v1188 = vpop.f32.mrb[0].mxu0
    %1189 = vmatprep.mubr.bf16.mxu0 0
    %1190 = vmatmul.mubr.bf16.gmra.mrb[0].mxu0 %v1141
    %v1191 = vpop.f32.mrb[0].mxu0
    %v1192 = vadd.f32 %v1111, %v1191
    %v1193 = vpop.f32.mrb[0].mxu0
    %v1194 = vpop.f32.mrb[0].mxu0
    %v1195 = vadd.f32 %v1111, %v1194
    %v1196 = vpop.f32.mrb[0].mxu0
    %1197 = vmatprep.mubr.bf16.mxu0 0
    %1198 = vmatmul.mubr.bf16.gmra.mrb[0].mxu0 %v1144
    %v1199 = vpop.f32.mrb[0].mxu0
    %v1200 = vadd.f32 %v1111, %v1199
    %v1201 = vpop.f32.mrb[0].mxu0
    %v1202 = vpop.f32.mrb[0].mxu0
    %v1203 = vadd.f32 %v1111, %v1202
    %v1204 = vpop.f32.mrb[0].mxu0
    %1205 = vmatprep.mubr.bf16.mxu0 0
    %1206 = vmatmul.mubr.bf16.gmra.mrb[0].mxu0 %v1147
    %v1207 = vpop.f32.mrb[0].mxu0
    %v1208 = vadd.f32 %v1111, %v1207
    %v1209 = vpop.f32.mrb[0].mxu0
    %v1210 = vpop.f32.mrb[0].mxu0
    %v1211 = vadd.f32 %v1111, %v1210
    %v1212 = vpop.f32.mrb[0].mxu0
    %1213 = vdwg.mxu0
    %v1214 = vmax.f32 %v1184, 0.0
    %v1215 = vmax.f32 %v1187, 0.0
    %v1216 = vmax.f32 %v1192, 0.0
    %v1217 = vmax.f32 %v1195, 0.0
    %v1218 = vmax.f32 %v1200, 0.0
    %v1219 = vmax.f32 %v1203, 0.0
    %v1220 = vmax.f32 %v1208, 0.0
    %v1221 = vmax.f32 %v1211, 0.0
    %v1222 = vrot.slane %v1214, 1
    %v1223 = vrot.slane %v1215, 1
    %v1224 = vrot.slane %v1216, 1
    %v1225 = vrot.slane %v1217, 1
    %v1226 = vrot.slane %v1218, 1
    %v1227 = vrot.slane %v1219, 1
    %v1228 = vrot.slane %v1220, 1
    %v1229 = vrot.slane %v1221, 1
    %v1230 = vsel %vm495, %v1228, %v1229
    %v1231 = vsel %vm495, %v1227, %v1228
    %v1232 = vsel %vm495, %v1226, %v1227
    %v1233 = vsel %vm495, %v1225, %v1226
    %v1234 = vsel %vm495, %v1224, %v1225
    %v1235 = vsel %vm495, %v1223, %v1224
    %v1236 = vsel %vm495, %v1222, %v1223
    %v1237 = vsel %vm495, %v1229, %v1222
    %v1238 = vmax.f32 %v1214, %v1236
    %v1239 = vmax.f32 %v1215, %v1235
    %v1240 = vmax.f32 %v1216, %v1234
    %v1241 = vmax.f32 %v1217, %v1233
    %v1242 = vmax.f32 %v1218, %v1232
    %v1243 = vmax.f32 %v1219, %v1231
    %v1244 = vmax.f32 %v1220, %v1230
    %v1245 = vmax.f32 %v1221, %v1237
    %1246 = vst.msk [vmem:[#allocation2] sm:$0xff] %vm890, %v1238
    %1247 = vst.msk [vmem:[#allocation2 + $0x8] sm:$0xff] %vm890, %v1239
    %1248 = vst.msk [vmem:[#allocation2 + $0x10] sm:$0xff] %vm890, %v1240
    %1249 = vst.msk [vmem:[#allocation2 + $0x18] sm:$0xff] %vm890, %v1241
    %1250 = vst.msk [vmem:[#allocation2 + $0x20] sm:$0xff] %vm890, %v1242
    %1251 = vst.msk [vmem:[#allocation2 + $0x28] sm:$0xff] %vm890, %v1243
    %1252 = vst.msk [vmem:[#allocation2 + $0x30] sm:$0xff] %vm890, %v1244
    %1253 = vst.msk [vmem:[#allocation2 + $0x38] sm:$0xff] %vm890, %v1245
    %v1254 = vld [vmem:[#allocation2] ss:$2 sm:$0xff]
    %v1255 = vld [vmem:[%s908] ss:$2 sm:$0xff]
    %v1256 = vld [vmem:[%s910] ss:$2 sm:$0xff]
    %v1257 = vld [vmem:[%s912] ss:$2 sm:$0xff]
    %v1258 = vand.u32 %v334, 15
    %v1259 = vand.u32 %v335, 15
    %v1260 = vand.u32 %v336, 15
    %v1261 = vand.u32 %v337, 15
    %vm1262 = vcmp.eq.s32.totalorder %v1258, 0
    %vm1263 = vcmp.eq.s32.totalorder %v1259, 0
    %vm1264 = vcmp.eq.s32.totalorder %v1260, 0
    %vm1265 = vcmp.eq.s32.totalorder %v1261, 0
    %v1266 = vrot.slane %v1254, 7
    %v1267 = vrot.slane %v1255, 7
    %v1268 = vrot.slane %v1256, 7
    %v1269 = vrot.slane %v1257, 7
    %v1270 = vsel %vm398, %v1268, %v1269
    %v1271 = vsel %vm398, %v1267, %v1268
    %v1272 = vsel %vm398, %v1266, %v1267
    %v1273 = vsel %vm398, %v1269, %v1266
    %v1274 = vsel %vm1262, 1, 0
    %v1275 = vsel %vm1263, 1, 0
    %v1276 = vsel %vm1264, 1, 0
    %v1277 = vsel %vm1265, 1, 0
    %vm1278 = vcmp.eq.s32.totalorder %v1274, 1
    %vm1279 = vcmp.eq.s32.totalorder %v1275, 1
    %vm1280 = vcmp.eq.s32.totalorder %v1276, 1
    %vm1281 = vcmp.eq.s32.totalorder %v1277, 1
    %v1282 = vsel %vm1278, 0.0, %v1273
    %v1283 = vsel %vm1279, 0.0, %v1272
    %v1284 = vsel %vm1280, 0.0, %v1271
    %v1285 = vsel %vm1281, 0.0, %v1270
    %vm1286 = vcmp.eq.s32.totalorder %v1258, 15
    %vm1287 = vcmp.eq.s32.totalorder %v1259, 15
    %vm1288 = vcmp.eq.s32.totalorder %v1260, 15
    %vm1289 = vcmp.eq.s32.totalorder %v1261, 15
    %v1290 = vrot.slane %v1254, 1
    %v1291 = vrot.slane %v1255, 1
    %v1292 = vrot.slane %v1256, 1
    %v1293 = vrot.slane %v1257, 1
    %v1294 = vsel %vm495, %v1292, %v1293
    %v1295 = vsel %vm495, %v1291, %v1292
    %v1296 = vsel %vm495, %v1290, %v1291
    %v1297 = vsel %vm495, %v1293, %v1290
    %v1298 = vsel %vm1286, 1, 0
    %v1299 = vsel %vm1287, 1, 0
    %v1300 = vsel %vm1288, 1, 0
    %v1301 = vsel %vm1289, 1, 0
    %vm1302 = vcmp.eq.s32.totalorder %v1298, 1
    %vm1303 = vcmp.eq.s32.totalorder %v1299, 1
    %vm1304 = vcmp.eq.s32.totalorder %v1300, 1
    %vm1305 = vcmp.eq.s32.totalorder %v1301, 1
    %v1306 = vsel %vm1302, 0.0, %v1296
    %v1307 = vsel %vm1303, 0.0, %v1295
    %v1308 = vsel %vm1304, 0.0, %v1294
    %v1309 = vsel %vm1305, 0.0, %v1297
    %v1310 = vld [vmem:[#allocation11 + $0x8] sm:$0x1]
    %v1311 = vlaneseq
    %v1312 = vshrl.u32 %v1311, 7
    %v1313 = vsub.s32 0, %v1312
    %v1314 = vrot.slane %v1310, %v1313
    %v1315 = vmul.f32 %v1282, %v1314
    %v1316 = vmul.f32 %v1283, %v1314
    %v1317 = vmul.f32 %v1284, %v1314
    %v1318 = vmul.f32 %v1285, %v1314
    %v1319 = vld [vmem:[#allocation11 + $0x9] sm:$0x1]
    %v1320 = vlaneseq
    %v1321 = vshrl.u32 %v1320, 7
    %v1322 = vsub.s32 0, %v1321
    %v1323 = vrot.slane %v1319, %v1322
    %v1324 = vmul.f32 %v1254, %v1323
    %v1325 = vmul.f32 %v1255, %v1323
    %v1326 = vmul.f32 %v1256, %v1323
    %v1327 = vmul.f32 %v1257, %v1323
    %v1328 = vadd.f32 %v1315, %v1324
    %v1329 = vadd.f32 %v1316, %v1325
    %v1330 = vadd.f32 %v1317, %v1326
    %v1331 = vadd.f32 %v1318, %v1327
    %v1332 = vld [vmem:[#allocation11 + $0xa] sm:$0x1]
    %v1333 = vlaneseq
    %v1334 = vshrl.u32 %v1333, 7
    %v1335 = vsub.s32 0, %v1334
    %v1336 = vrot.slane %v1332, %v1335
    %v1337 = vmul.f32 %v1306, %v1336
    %v1338 = vmul.f32 %v1307, %v1336
    %v1339 = vmul.f32 %v1308, %v1336
    %v1340 = vmul.f32 %v1309, %v1336
    %v1341 = vadd.f32 %v1328, %v1337
    %v1342 = vadd.f32 %v1329, %v1338
    %v1343 = vadd.f32 %v1330, %v1339
    %v1344 = vadd.f32 %v1331, %v1340
    %v1345 = vld [vmem:[#allocation11 + $0xb] sm:$0x1]
    %v1346 = vlaneseq
    %v1347 = vshrl.u32 %v1346, 7
    %v1348 = vsub.s32 0, %v1347
    %v1349 = vrot.slane %v1345, %v1348
    %v1350 = vadd.f32 %v1341, %v1349
    %v1351 = vadd.f32 %v1342, %v1349
    %v1352 = vadd.f32 %v1343, %v1349
    %v1353 = vadd.f32 %v1344, %v1349
    %v1354 = vpack.c.bf16 %v1351, %v1350
    %v1355 = vpack.c.bf16 %v1353, %v1352
    %v1356 = vld [vmem:[%s10] sm:$0xff]
    %v1357 = vld [vmem:[%s10 + $0x8] sm:$0xff]
    %v1358 = vld [vmem:[%s10 + $0x10] sm:$0xf]
    %v1359 = vld [vmem:[%s10 + $0x14] sm:$0xff]
    %v1360 = vld [vmem:[%s10 + $0x1c] sm:$0xff]
    %v1361 = vld [vmem:[%s10 + $0x24] sm:$0xf]
    %v1362 = vld [vmem:[%s10 + $0x28] sm:$0xff]
    %v1363 = vld [vmem:[%s10 + $0x30] sm:$0xff]
    %v1364 = vld [vmem:[%s10 + $0x38] sm:$0xf]
    %v1365 = vld [vmem:[%s10 + $0x3c] sm:$0xff]
    %v1366 = vld [vmem:[%s10 + $0x44] sm:$0xff]
    %v1367 = vld [vmem:[%s10 + $0x4c] sm:$0xf]
    %v1368 = vld [vmem:[%s10 + $0x50] sm:$0xff]
    %v1369 = vld [vmem:[%s10 + $0x58] sm:$0xff]
    %v1370 = vld [vmem:[%s10 + $0x60] sm:$0xf]
    %v1371 = vld [vmem:[%s10 + $0x64] sm:$0xff]
    %v1372 = vld [vmem:[%s10 + $0x6c] sm:$0xff]
    %v1373 = vld [vmem:[%s10 + $0x74] sm:$0xf]
    %v1374 = vld [vmem:[%s10 + $0x78] sm:$0xff]
    %v1375 = vld [vmem:[%s10 + $0x80] sm:$0xff]
    %v1376 = vld [vmem:[%s10 + $0x88] sm:$0xf]
    %v1377 = vld [vmem:[%s10 + $0x8c] sm:$0xff]
    %v1378 = vld [vmem:[%s10 + $0x94] sm:$0xff]
    %v1379 = vld [vmem:[%s10 + $0x9c] sm:$0xf]
    %v1380 = vld [vmem:[#allocation12 + $0x2] sm:$0x1f]
    %v1382 = vlaneseq
    %v1383 = vshrl.u32 %v1382, 7
    %v1384 = vsub.s32 0, %v1383
    %v1385 = vrot.slane %v1380, %v1384
    %v1386 = vlaneseq
    %v1387 = vshrl.u32 %v1386, 7
    %v1388 = vsub.s32 1, %v1387
    %v1389 = vrot.slane %v1380, %v1388
    %v1390 = vlaneseq
    %v1391 = vshrl.u32 %v1390, 7
    %v1392 = vsub.s32 2, %v1391
    %v1393 = vrot.slane %v1380, %v1392
    %v1394 = vlaneseq
    %v1395 = vshrl.u32 %v1394, 7
    %v1396 = vsub.s32 3, %v1395
    %v1397 = vrot.slane %v1380, %v1396
    %v1398 = vlaneseq
    %v1399 = vshrl.u32 %v1398, 7
    %v1400 = vsub.s32 4, %v1399
    %v1401 = vrot.slane %v1380, %v1400
    %v1431 = vunpack.c.l.b16 %v1356
    %v1432 = vunpack.c.h.b16 %v1356
    %v1433 = vunpack.c.l.b16 %v1357
    %v1434 = vunpack.c.h.b16 %v1357
    %v1435 = vunpack.c.l.b16 %v1358
    %v1436 = vunpack.c.l.b16 %v1359
    %v1437 = vunpack.c.h.b16 %v1359
    %v1438 = vunpack.c.l.b16 %v1360
    %v1439 = vunpack.c.h.b16 %v1360
    %v1440 = vunpack.c.l.b16 %v1361
    %v1441 = vunpack.c.l.b16 %v1362
    %v1442 = vunpack.c.h.b16 %v1362
    %v1443 = vunpack.c.l.b16 %v1363
    %v1444 = vunpack.c.h.b16 %v1363
    %v1445 = vunpack.c.l.b16 %v1364
    %v1446 = vunpack.c.l.b16 %v1365
    %v1447 = vunpack.c.h.b16 %v1365
    %v1448 = vunpack.c.l.b16 %v1366
    %v1449 = vunpack.c.h.b16 %v1366
    %v1450 = vunpack.c.l.b16 %v1367
    %v1451 = vunpack.c.l.b16 %v1368
    %v1452 = vunpack.c.h.b16 %v1368
    %v1453 = vunpack.c.l.b16 %v1369
    %v1454 = vunpack.c.h.b16 %v1369
    %v1455 = vunpack.c.l.b16 %v1370
    %v1456 = vunpack.c.l.b16 %v1371
    %v1457 = vunpack.c.h.b16 %v1371
    %v1458 = vunpack.c.l.b16 %v1372
    %v1459 = vunpack.c.h.b16 %v1372
    %v1460 = vunpack.c.l.b16 %v1373
    %v1461 = vunpack.c.l.b16 %v1374
    %v1462 = vunpack.c.h.b16 %v1374
    %v1463 = vunpack.c.l.b16 %v1375
    %v1464 = vunpack.c.h.b16 %v1375
    %v1465 = vunpack.c.l.b16 %v1376
    %v1466 = vunpack.c.l.b16 %v1377
    %v1467 = vunpack.c.h.b16 %v1377
    %v1468 = vunpack.c.l.b16 %v1378
    %v1469 = vunpack.c.h.b16 %v1378
    %v1470 = vunpack.c.l.b16 %v1379
    %v1471 = vpack.c.b16 %v1436, %v1431
    %v1472 = vpack.c.b16 %v1437, %v1432
    %v1473 = vpack.c.b16 %v1438, %v1433
    %v1474 = vpack.c.b16 %v1439, %v1434
    %v1475 = vpack.c.b16 %v1440, %v1435
    %v1476 = vpack.c.b16 %v1446, %v1441
    %v1477 = vpack.c.b16 %v1447, %v1442
    %v1478 = vpack.c.b16 %v1448, %v1443
    %v1479 = vpack.c.b16 %v1449, %v1444
    %v1480 = vpack.c.b16 %v1450, %v1445
    %v1481 = vpack.c.b16 %v1456, %v1451
    %v1482 = vpack.c.b16 %v1457, %v1452
    %v1483 = vpack.c.b16 %v1458, %v1453
    %v1484 = vpack.c.b16 %v1459, %v1454
    %v1485 = vpack.c.b16 %v1460, %v1455
    %v1486 = vpack.c.b16 %v1466, %v1461
    %v1487 = vpack.c.b16 %v1467, %v1462
    %v1488 = vpack.c.b16 %v1468, %v1463
    %v1489 = vpack.c.b16 %v1469, %v1464
    %v1490 = vpack.c.b16 %v1470, %v1465
    %v1512 = vsel %vm890, %v1354, 0
    %v1515 = vsel %vm890, %v1355, 0
    %1517 = vmatprep.subr.bf16.mxu0 %v1472
    %1518 = vmatpush1.bf16.msra.mxu0 %v1471
    %1519 = vmatprep.subr.bf16.mxu0 %v1477
    %1520 = vmatpush1.bf16.msra.mxu0 %v1476
    %1521 = vmatprep.subr.bf16.mxu0 %v1482
    %1522 = vmatpush1.bf16.msra.mxu0 %v1481
    %1523 = vmatprep.subr.bf16.mxu0 %v1487
    %1524 = vmatpush1.bf16.msra.mxu0 %v1486
    %1525 = vmatprep.subr.bf16.mxu0 0
    %1526 = vmatpush1.bf16.msra.mxu0 0
    %1527 = vmatprep.subr.bf16.mxu0 0
    %1528 = vmatpush1.bf16.msra.mxu0 0
    %1529 = vmatprep.subr.bf16.mxu0 0
    %1530 = vmatpush1.bf16.msra.mxu0 0
    %1531 = vmatprep.subr.bf16.mxu0 0
    %1532 = vmatpush1.bf16.msra.mxu0 0
    %1533 = vmatprep.subr.bf16.mxu0 0
    %1534 = vmatpush1.bf16.msra.mxu0 0
    %1535 = vmatprep.subr.bf16.mxu0 0
    %1536 = vmatpush1.bf16.msra.mxu0 0
    %1537 = vmatprep.subr.bf16.mxu0 0
    %1538 = vmatpush1.bf16.msra.mxu0 0
    %1539 = vmatprep.subr.bf16.mxu0 0
    %1540 = vmatpush1.bf16.msra.mxu0 0
    %1541 = vmatprep.subr.bf16.mxu0 0
    %1542 = vmatpush1.bf16.msra.mxu0 0
    %1543 = vmatprep.subr.bf16.mxu0 0
    %1544 = vmatpush1.bf16.msra.mxu0 0
    %1545 = vmatprep.subr.bf16.mxu0 0
    %1546 = vmatpush1.bf16.msra.mxu0 0
    %1547 = vmatprep.subr.bf16.mxu0 0
    %1548 = vmatpush1.bf16.msra.mxu0 0
    %1549 = vmatprep.mubr.bf16.mxu0 0
    %1550 = vmatmul.mubr.bf16.gmra.mrb[0].mxu0 %v1512
    %v1551 = vpop.f32.mrb[0].mxu0
    %v1552 = vadd.f32 %v1385, %v1551
    %v1553 = vpop.f32.mrb[0].mxu0
    %v1554 = vadd.f32 %v1389, %v1553
    %v1555 = vpop.f32.mrb[0].mxu0
    %v1556 = vadd.f32 %v1385, %v1555
    %v1557 = vpop.f32.mrb[0].mxu0
    %v1558 = vadd.f32 %v1389, %v1557
    %1559 = vmatprep.mubr.bf16.mxu0 0
    %1560 = vmatmul.mubr.bf16.gmra.mrb[0].mxu0 %v1515
    %v1561 = vpop.f32.mrb[0].mxu0
    %v1562 = vadd.f32 %v1385, %v1561
    %v1563 = vpop.f32.mrb[0].mxu0
    %v1564 = vadd.f32 %v1389, %v1563
    %v1565 = vpop.f32.mrb[0].mxu0
    %v1566 = vadd.f32 %v1385, %v1565
    %v1567 = vpop.f32.mrb[0].mxu0
    %v1568 = vadd.f32 %v1389, %v1567
    %1569 = vdwg.mxu0
    %1570 = vmatprep.subr.bf16.mxu0 %v1474
    %1571 = vmatpush1.bf16.msra.mxu0 %v1473
    %1572 = vmatprep.subr.bf16.mxu0 %v1479
    %1573 = vmatpush1.bf16.msra.mxu0 %v1478
    %1574 = vmatprep.subr.bf16.mxu0 %v1484
    %1575 = vmatpush1.bf16.msra.mxu0 %v1483
    %1576 = vmatprep.subr.bf16.mxu0 %v1489
    %1577 = vmatpush1.bf16.msra.mxu0 %v1488
    %1578 = vmatprep.subr.bf16.mxu0 0
    %1579 = vmatpush1.bf16.msra.mxu0 0
    %1580 = vmatprep.subr.bf16.mxu0 0
    %1581 = vmatpush1.bf16.msra.mxu0 0
    %1582 = vmatprep.subr.bf16.mxu0 0
    %1583 = vmatpush1.bf16.msra.mxu0 0
    %1584 = vmatprep.subr.bf16.mxu0 0
    %1585 = vmatpush1.bf16.msra.mxu0 0
    %1586 = vmatprep.subr.bf16.mxu0 0
    %1587 = vmatpush1.bf16.msra.mxu0 0
    %1588 = vmatprep.subr.bf16.mxu0 0
    %1589 = vmatpush1.bf16.msra.mxu0 0
    %1590 = vmatprep.subr.bf16.mxu0 0
    %1591 = vmatpush1.bf16.msra.mxu0 0
    %1592 = vmatprep.subr.bf16.mxu0 0
    %1593 = vmatpush1.bf16.msra.mxu0 0
    %1594 = vmatprep.subr.bf16.mxu0 0
    %1595 = vmatpush1.bf16.msra.mxu0 0
    %1596 = vmatprep.subr.bf16.mxu0 0
    %1597 = vmatpush1.bf16.msra.mxu0 0
    %1598 = vmatprep.subr.bf16.mxu0 0
    %1599 = vmatpush1.bf16.msra.mxu0 0
    %1600 = vmatprep.subr.bf16.mxu0 0
    %1601 = vmatpush1.bf16.msra.mxu0 0
    %1602 = vmatprep.mubr.bf16.mxu0 0
    %1603 = vmatmul.mubr.bf16.gmra.mrb[0].mxu0 %v1512
    %v1604 = vpop.f32.mrb[0].mxu0
    %v1605 = vadd.f32 %v1393, %v1604
    %v1606 = vpop.f32.mrb[0].mxu0
    %v1607 = vadd.f32 %v1397, %v1606
    %v1608 = vpop.f32.mrb[0].mxu0
    %v1609 = vadd.f32 %v1393, %v1608
    %v1610 = vpop.f32.mrb[0].mxu0
    %v1611 = vadd.f32 %v1397, %v1610
    %1612 = vmatprep.mubr.bf16.mxu0 0
    %1613 = vmatmul.mubr.bf16.gmra.mrb[0].mxu0 %v1515
    %v1614 = vpop.f32.mrb[0].mxu0
    %v1615 = vadd.f32 %v1393, %v1614
    %v1616 = vpop.f32.mrb[0].mxu0
    %v1617 = vadd.f32 %v1397, %v1616
    %v1618 = vpop.f32.mrb[0].mxu0
    %v1619 = vadd.f32 %v1393, %v1618
    %v1620 = vpop.f32.mrb[0].mxu0
    %v1621 = vadd.f32 %v1397, %v1620
    %1622 = vdwg.mxu0
    %1623 = vmatprep.subr.bf16.mxu0 0
    %1624 = vmatpush1.bf16.msra.mxu0 %v1475
    %1625 = vmatprep.subr.bf16.mxu0 0
    %1626 = vmatpush1.bf16.msra.mxu0 %v1480
    %1627 = vmatprep.subr.bf16.mxu0 0
    %1628 = vmatpush1.bf16.msra.mxu0 %v1485
    %1629 = vmatprep.subr.bf16.mxu0 0
    %1630 = vmatpush1.bf16.msra.mxu0 %v1490
    %1631 = vmatprep.subr.bf16.mxu0 0
    %1632 = vmatpush1.bf16.msra.mxu0 0
    %1633 = vmatprep.subr.bf16.mxu0 0
    %1634 = vmatpush1.bf16.msra.mxu0 0
    %1635 = vmatprep.subr.bf16.mxu0 0
    %1636 = vmatpush1.bf16.msra.mxu0 0
    %1637 = vmatprep.subr.bf16.mxu0 0
    %1638 = vmatpush1.bf16.msra.mxu0 0
    %1639 = vmatprep.subr.bf16.mxu0 0
    %1640 = vmatpush1.bf16.msra.mxu0 0
    %1641 = vmatprep.subr.bf16.mxu0 0
    %1642 = vmatpush1.bf16.msra.mxu0 0
    %1643 = vmatprep.subr.bf16.mxu0 0
    %1644 = vmatpush1.bf16.msra.mxu0 0
    %1645 = vmatprep.subr.bf16.mxu0 0
    %1646 = vmatpush1.bf16.msra.mxu0 0
    %1647 = vmatprep.subr.bf16.mxu0 0
    %1648 = vmatpush1.bf16.msra.mxu0 0
    %1649 = vmatprep.subr.bf16.mxu0 0
    %1650 = vmatpush1.bf16.msra.mxu0 0
    %1651 = vmatprep.subr.bf16.mxu0 0
    %1652 = vmatpush1.bf16.msra.mxu0 0
    %1653 = vmatprep.subr.bf16.mxu0 0
    %1654 = vmatpush1.bf16.msra.mxu0 0
    %1655 = vmatprep.mubr.bf16.mxu0 0
    %1656 = vmatmul.mubr.bf16.gmra.mrb[0].mxu0 %v1512
    %v1657 = vpop.f32.mrb[0].mxu0
    %v1658 = vadd.f32 %v1401, %v1657
    %v1659 = vpop.f32.mrb[0].mxu0
    %v1660 = vpop.f32.mrb[0].mxu0
    %v1661 = vadd.f32 %v1401, %v1660
    %v1662 = vpop.f32.mrb[0].mxu0
    %1663 = vmatprep.mubr.bf16.mxu0 0
    %1664 = vmatmul.mubr.bf16.gmra.mrb[0].mxu0 %v1515
    %v1665 = vpop.f32.mrb[0].mxu0
    %v1666 = vadd.f32 %v1401, %v1665
    %v1667 = vpop.f32.mrb[0].mxu0
    %v1668 = vpop.f32.mrb[0].mxu0
    %v1669 = vadd.f32 %v1401, %v1668
    %v1670 = vpop.f32.mrb[0].mxu0
    %1671 = vdwg.mxu0
    %v1672 = vmax.f32 %v1552, %v1556
    %v1673 = vrot.slane %v1672, 4
    %v1674 = vmax.f32 %v1672, %v1673
    %v1675 = vrot.slane %v1674, 2
    %v1676 = vmax.f32 %v1674, %v1675
    %v1677 = vrot.slane %v1676, 1
    %v1678 = vmax.f32 %v1676, %v1677
    %v1679 = vmax.f32 %v1554, %v1558
    %v1680 = vrot.slane %v1679, 4
    %v1681 = vmax.f32 %v1679, %v1680
    %v1682 = vrot.slane %v1681, 2
    %v1683 = vmax.f32 %v1681, %v1682
    %v1684 = vrot.slane %v1683, 1
    %v1685 = vmax.f32 %v1683, %v1684
    %v1686 = vmax.f32 %v1605, %v1609
    %v1687 = vrot.slane %v1686, 4
    %v1688 = vmax.f32 %v1686, %v1687
    %v1689 = vrot.slane %v1688, 2
    %v1690 = vmax.f32 %v1688, %v1689
    %v1691 = vrot.slane %v1690, 1
    %v1692 = vmax.f32 %v1690, %v1691
    %v1693 = vmax.f32 %v1607, %v1611
    %v1694 = vrot.slane %v1693, 4
    %v1695 = vmax.f32 %v1693, %v1694
    %v1696 = vrot.slane %v1695, 2
    %v1697 = vmax.f32 %v1695, %v1696
    %v1698 = vrot.slane %v1697, 1
    %v1699 = vmax.f32 %v1697, %v1698
    %v1700 = vsel %vm890, %v1658, -inf
    %v1701 = vsel %vm890, %v1661, -inf
    %v1702 = vmax.f32 %v1700, %v1701
    %v1703 = vrot.slane %v1702, 4
    %v1704 = vmax.f32 %v1702, %v1703
    %v1705 = vrot.slane %v1704, 2
    %v1706 = vmax.f32 %v1704, %v1705
    %v1707 = vrot.slane %v1706, 1
    %v1708 = vmax.f32 %v1706, %v1707
    %v1709 = vmax.f32 %v1562, %v1566
    %v1710 = vrot.slane %v1709, 4
    %v1711 = vmax.f32 %v1709, %v1710
    %v1712 = vrot.slane %v1711, 2
    %v1713 = vmax.f32 %v1711, %v1712
    %v1714 = vrot.slane %v1713, 1
    %v1715 = vmax.f32 %v1713, %v1714
    %v1716 = vmax.f32 %v1564, %v1568
    %v1717 = vrot.slane %v1716, 4
    %v1718 = vmax.f32 %v1716, %v1717
    %v1719 = vrot.slane %v1718, 2
    %v1720 = vmax.f32 %v1718, %v1719
    %v1721 = vrot.slane %v1720, 1
    %v1722 = vmax.f32 %v1720, %v1721
    %v1723 = vmax.f32 %v1615, %v1619
    %v1724 = vrot.slane %v1723, 4
    %v1725 = vmax.f32 %v1723, %v1724
    %v1726 = vrot.slane %v1725, 2
    %v1727 = vmax.f32 %v1725, %v1726
    %v1728 = vrot.slane %v1727, 1
    %v1729 = vmax.f32 %v1727, %v1728
    %v1730 = vmax.f32 %v1617, %v1621
    %v1731 = vrot.slane %v1730, 4
    %v1732 = vmax.f32 %v1730, %v1731
    %v1733 = vrot.slane %v1732, 2
    %v1734 = vmax.f32 %v1732, %v1733
    %v1735 = vrot.slane %v1734, 1
    %v1736 = vmax.f32 %v1734, %v1735
    %v1737 = vsel %vm890, %v1666, -inf
    %v1738 = vsel %vm890, %v1669, -inf
    %v1739 = vmax.f32 %v1737, %v1738
    %v1740 = vrot.slane %v1739, 4
    %v1741 = vmax.f32 %v1739, %v1740
    %v1742 = vrot.slane %v1741, 2
    %v1743 = vmax.f32 %v1741, %v1742
    %v1744 = vrot.slane %v1743, 1
    %v1745 = vmax.f32 %v1743, %v1744
    %vm1746 = vcmask 517120
    %1747 = vst.msk [vmem:[#allocation15] sm:$0x3] %vm1746, %v316
    %v1758 = vcombine.low %v1678, %v1685
    %v1759 = vcombine.low %v1692, %v1699
    %v1761 = vunpack.c.l.s4 1983009808
    %v1762 = vunpack.c.0.s8 %v1761
    %v1763 = vlaneseq
    %v1764 = vshrl.u32 %v1763, 7
    %v1765 = vsub.s32 %v1762, %v1764
    %v1766 = vrot.slane %v1758, %v1765
    %v1768 = vunpack.c.l.s4 1983009808
    %v1769 = vunpack.c.0.s8 %v1768
    %v1770 = vlaneseq
    %v1771 = vshrl.u32 %v1770, 7
    %v1772 = vsub.s32 %v1769, %v1771
    %v1773 = vrot.slane %v1759, %v1772
    %v1774 = vcombine.low %v1766, %v1773
    %v1776 = vunpack.c.l.s4 1983009808
    %v1777 = vunpack.c.0.s8 %v1776
    %v1778 = vlaneseq
    %v1779 = vshrl.u32 %v1778, 7
    %v1780 = vsub.s32 %v1777, %v1779
    %v1781 = vrot.slane %v1708, %v1780
    %v1782 = vcombine.low %v1715, %v1722
    %v1783 = vcombine.low %v1729, %v1736
    %v1785 = vunpack.c.l.s4 1983009808
    %v1786 = vunpack.c.0.s8 %v1785
    %v1787 = vlaneseq
    %v1788 = vshrl.u32 %v1787, 7
    %v1789 = vsub.s32 %v1786, %v1788
    %v1790 = vrot.slane %v1782, %v1789
    %v1792 = vunpack.c.l.s4 1983009808
    %v1793 = vunpack.c.0.s8 %v1792
    %v1794 = vlaneseq
    %v1795 = vshrl.u32 %v1794, 7
    %v1796 = vsub.s32 %v1793, %v1795
    %v1797 = vrot.slane %v1783, %v1796
    %v1798 = vcombine.low %v1790, %v1797
    %v1800 = vunpack.c.l.s4 1983009808
    %v1801 = vunpack.c.0.s8 %v1800
    %v1802 = vlaneseq
    %v1803 = vshrl.u32 %v1802, 7
    %v1804 = vsub.s32 %v1801, %v1803
    %v1805 = vrot.slane %v1745, %v1804
    %vm1806 = vcmask 1044484
    %v1807 = vsel %vm1806, %v1774, %v1774
    %vm1808 = vcmask 1046534
    %v1809 = vsel %vm1808, %v1774, %v1807
    %v1810 = vrot.slane %v1798, 7
    %vm1811 = vcmask 1041409
    %v1812 = vsel %vm1811, %v1810, %v1809
    %vm1813 = vcmask 1043459
    %v1814 = vsel %vm1813, %v1810, %v1812
    %vm1815 = vcmask 1045509
    %v1816 = vsel %vm1815, %v1810, %v1814
    %vm1817 = vcmask 1047559
    %v1818 = vsel %vm1817, %v1810, %v1816
    %v1819 = vsel %vm1806, %v1781, %v1781
    %v1820 = vsel %vm1808, %v1781, %v1819
    %v1821 = vrot.slane %v1805, 7
    %v1822 = vsel %vm1811, %v1821, %v1820
    %v1823 = vsel %vm1813, %v1821, %v1822
    %v1824 = vsel %vm1815, %v1821, %v1823
    %v1825 = vsel %vm1817, %v1821, %v1824
    %1826 = vrot.lane.b32.xlu0 %v1818, 64
    %v1827 = vpop.permute.xlu0 %1826
    %1828 = vrot.lane.b32.xlu0 %v1825, 64
    %v1829 = vpop.permute.xlu0 %1828
    %v1830 = vrot.slane %v1827, 6
    %v1831 = vsel %vm890, %v1830, %v1827
    %v1832 = vsel %vm890, %v1830, %v1829
    %vm1835 = vcmask 1041920
    %vm1836 = vcmask 1043458
    %vm1837 = vmor %vm1836, %vm1835
    %vm1838 = vcmask 1045508
    %vm1839 = vmor %vm1838, %vm1837
    %vm1840 = vcmask 1047558
    %vm1841 = vmor %vm1840, %vm1839
    %1842 = vst.msk [vmem:[#allocation15] sm:$0xff] %vm1841, %v1831
    %1843 = vst [vmem:[#allocation15 + $0x8] sm:$0x3] %v1832
    %v1846 = vunpack.c.l.s4 1983009808
    %v1847 = vunpack.c.0.s8 %v1846
    %v1848 = vlaneseq
    %v1849 = vshrl.u32 %v1848, 7
    %v1850 = vsub.s32 %v1847, %v1849
    %v1851 = vrot.slane %v316, %v1850
    %v1852 = vcombine.high %v1851, %v1851
    %1853 = vrot.lane.b32.xlu0 %v1852, 64
    %v1854 = vpop.permute.xlu0 %1853
    %1856 = vst.msk [vmem:[#allocation15 + $0xa] sm:$0x3] %vm1746, %v1854
    // Predicated region
    $region74: #{tpu_custom_call.1} parent=1 // pred_check
      _
    $region75: #{tpu_custom_call.1} parent=1 // pred_check_branch
      %1858 = sbr.rel (0) target = $region77
    $region76: #{tpu_custom_call.1} parent=1 // pred_region
      %s1860 = ssub.s32 192, 192
      %1861 = vsyncadd [#allocation5], %s1860
      %s1863 = sshll.u32 [#allocation15], 4
      %s1864 = int_to_ptr.vmem [resolvable:$true] %s1863
      %1866 = dma.vmem_to_hbm [thread:$0]  %s1864, 192, %s11, [#allocation5]
    $region77: #{tpu_custom_call.1} parent=1 // pred_fallthru
      _
    // Predicated region
    $region78: #{tpu_custom_call.1} parent=1 // pred_check
      _
    $region79: #{tpu_custom_call.1} parent=1 // pred_check_branch
      %1868 = sbr.rel (0) target = $region81
    $region80: #{tpu_custom_call.1} parent=1 // pred_region
      %1869 = dma.done [#allocation5], 192
    $region81: #{tpu_custom_call.1} parent=1 // pred_fallthru
      _
    %1870 = vsyncpa [#allocation4], 1
    %1871 = vsyncpa [#allocation7], 1
    %1872 = vsyncpa [#allocation10], 1
    %1873 = vsyncpa [#allocation13], 1
    %1874 = vsyncpa [#allocation5], 1

</llo_original>
